<compile_context>
chip_gen: v6e
topology: v6e:2x2x1
jax: 0.10.0
libtpu: 0.0.40
codegen_flags: <defaults>
</compile_context>

<pallas_src>
import jax
import jax.numpy as jnp
import numpy as np
from jax.experimental import pallas as pl
from jax.experimental.pallas import tpu as pltpu

C_OUT = 2
KH = KW = 3
H_IN = W_IN = 64
H_POOL = W_POOL = 31
FEAT = C_OUT * H_POOL * W_POOL          # 1922
N_CLASSES = 7
LANES = C_OUT * W_POOL                  # 62 = channel-packed lane width


# ------------------------------ Fused kernel --------------------------------
def fused_forward_kernel(wconv_ref, wlin_ref, blin_ref, x_ref, out_ref):
    """Fused Conv(1,2,3) + ReLU + MaxPool(2,2) + Linear(1922,7) + Softmax.

    wconv_ref: VMEM (10, 62)  rows 0..8 = conv taps (t = di*3+dj), row 9 = bias;
               each row channel-packed along lanes: [c0]*31 ++ [c1]*31.
    wlin_ref : VMEM (7, 31, 62)  linear weight re-laid-out as w[o, i, c*31+j].
    blin_ref : VMEM (1, 7)    linear bias.
    x_ref    : VMEM (BB, 2, 2, 32, 32)  phase-split input block.
    out_ref  : VMEM (BB, 7)   softmax probabilities.
    """
    wconv = wconv_ref[...]                                     # (10, 62)
    # Hoist lane-packed weight / bias rows (avoid re-broadcasting per tap).
    w_rows = [jnp.broadcast_to(wconv[t], (1, H_POOL, LANES)) for t in range(9)]
    b_row = jnp.broadcast_to(wconv[9], (1, H_POOL, LANES))

    # Hoist the 16 distinct shifted input views, channel-doubled along lanes.
    xd = {}
    for hq in range(2):
        for wp in range(2):
            base = x_ref[:, hq, wp, :, :]                      # (BB, 32, 32)
            for ri in range(2):
                for ci in range(2):
                    s = base[:, ri:ri + H_POOL, ci:ci + W_POOL]  # (BB, 31, 31)
                    xd[(hq, wp, ri, ci)] = jnp.concatenate([s, s], axis=-1)

    # 4 pool phases x 9 conv taps on (BB, 31, 62) tiles; running max == pool.
    pooled = None
    for a in range(2):
        for b in range(2):
            acc = None
            for di in range(KH):
                for dj in range(KW):
                    hq, ri = (a + di) % 2, (a + di) // 2
                    wp, ci = (b + dj) % 2, (b + dj) // 2
                    term = w_rows[di * 3 + dj] * xd[(hq, wp, ri, ci)]
                    acc = term if acc is None else acc + term
            pooled = acc if pooled is None else jnp.maximum(pooled, acc)

    # Bias + ReLU once (bias is phase-invariant; ReLU commutes with max).
    feats = jnp.maximum(pooled + b_row, 0.0)                   # (BB, 31, 62)

    # Linear(1922, 7) as 7 lane+sublane reductions against re-laid-out weight.
    wlin = wlin_ref[...]                                       # (7, 31, 62)
    cols = []
    for o in range(N_CLASSES):
        prod = feats * wlin[o]                                 # (BB, 31, 62)
        s_lane = jnp.sum(prod, axis=2)                         # (BB, 31)
        cols.append(jnp.sum(s_lane, axis=1, keepdims=True))    # (BB, 1)
    logits = jnp.concatenate(cols, axis=1) + blin_ref[...]     # (BB, 7)

    # Numerically stable softmax over the 7 classes.
    m = jnp.max(logits, axis=-1, keepdims=True)
    e = jnp.exp(logits - m)
    out_ref[...] = e / jnp.sum(e, axis=-1, keepdims=True)


# ------------------------------ Host wrapper ---------------------------------
def _prep_params(params):
    w_conv = params["w_conv"].astype(jnp.float32)              # (2, 1, 3, 3)
    b_conv = params["b_conv"].astype(jnp.float32)              # (2,)
    w_lin = params["w_lin"].astype(jnp.float32)                # (7, 1922)
    b_lin = params["b_lin"].astype(jnp.float32)                # (7,)

    # Lane-packed conv taps + bias: row t = [w[0,t]]*31 ++ [w[1,t]]*31.
    taps = jnp.repeat(w_conv.reshape(C_OUT, KH * KW).T, W_POOL, axis=1)  # (9,62)
    bias_row = jnp.repeat(b_conv.reshape(1, C_OUT), W_POOL, axis=1)      # (1,62)
    wconv_packed = jnp.concatenate([taps, bias_row], axis=0)             # (10,62)

    # Re-layout linear weight (torch order c*961+i*31+j) to kernel order
    # (i, c*31+j) so the fused kernel needs no in-kernel reshape.
    wlin_r = (w_lin.reshape(N_CLASSES, C_OUT, H_POOL, W_POOL)
              .transpose(0, 2, 1, 3)
              .reshape(N_CLASSES, H_POOL, LANES))                        # (7,31,62)
    return wconv_packed, wlin_r, b_lin.reshape(1, N_CLASSES)


def test_class_forward(x, params, *, batch_block=16):
    n = x.shape[0]
    bb = min(n, batch_block)
    n_pad = -(-n // bb) * bb
    if n_pad != n:
        x = jnp.pad(x, ((0, n_pad - n), (0, 0), (0, 0), (0, 0)))

    # Phase-split NCHW -> (N, hq, wp, H/2, W/2)  (cheap host-side layout op).
    x_p = (x.reshape(n_pad, H_IN // 2, 2, W_IN // 2, 2)
           .transpose(0, 2, 4, 1, 3))                          # (N, 2, 2, 32, 32)

    wconv_packed, wlin_r, blin = _prep_params(params)

    out = pl.pallas_call(
        fused_forward_kernel,
        out_shape=jax.ShapeDtypeStruct((n_pad, N_CLASSES), jnp.float32),
        grid=(n_pad // bb,),
        in_specs=[
            pl.BlockSpec(memory_space=pltpu.MemorySpace.VMEM),   # conv w+b (10,62)
            pl.BlockSpec(memory_space=pltpu.MemorySpace.VMEM),   # linear w (7,31,62)
            pl.BlockSpec(memory_space=pltpu.MemorySpace.VMEM),   # linear b (1,7)
            pl.BlockSpec((bb, 2, 2, H_IN // 2, W_IN // 2),
                         lambda i: (i, 0, 0, 0, 0)),
        ],
        out_specs=pl.BlockSpec((bb, N_CLASSES), lambda i: (i, 0)),
        compiler_params=pltpu.CompilerParams(
            dimension_semantics=("parallel",)),
    )(wconv_packed, wlin_r, blin, x_p)
    return out[:n]


# --------------------------- Pure-JAX reference ------------------------------
def reference_forward(x, params):
    y = jax.lax.conv_general_dilated(
        x, params["w_conv"], window_strides=(1, 1), padding="VALID",
        dimension_numbers=("NCHW", "OIHW", "NCHW"))
    y = jnp.maximum(y + params["b_conv"].reshape(1, C_OUT, 1, 1), 0.0)
    n = x.shape[0]
    y = y.reshape(n, C_OUT, H_POOL, 2, W_POOL, 2).max(axis=(3, 5))
    feats = y.reshape(n, FEAT)
    logits = feats @ params["w_lin"].T + params["b_lin"]
    return jax.nn.softmax(logits, axis=1)


if __name__ == "__main__":
    key = jax.random.PRNGKey(0)
    k1, k2, k3, k4, kx = jax.random.split(key, 5)
    params = {
        "w_conv": jax.random.normal(k1, (C_OUT, 1, KH, KW), jnp.float32) * 0.3,
        "b_conv": jax.random.normal(k2, (C_OUT,), jnp.float32) * 0.1,
        "w_lin": jax.random.normal(k3, (N_CLASSES, FEAT), jnp.float32) * 0.02,
        "b_lin": jax.random.normal(k4, (N_CLASSES,), jnp.float32) * 0.1,
    }
    # batch=2; spatial must be 64x64 (fixed by the 31*31*2 flatten in the model)
    x = jax.random.normal(kx, (2, 1, H_IN, W_IN), jnp.float32)

    out = jax.block_until_ready(test_class_forward(x, params))
    ref = jax.block_until_ready(reference_forward(x, params))

    assert out.shape == (2, N_CLASSES)
    np.testing.assert_allclose(np.asarray(out), np.asarray(ref),
                               rtol=2e-2, atol=2e-3)
    assert np.allclose(np.asarray(out).sum(axis=1), 1.0, atol=1e-4)
    print("KERNEL_OK")
</pallas_src>

<mosaic_0001>
module attributes {stable_mosaic.version = 11 : i64} {
  func.func @fused_forward_kernel(%arg0: i32, %arg1: memref<10x62xf32, #tpu.memory_space<vmem>>, %arg2: memref<7x31x62xf32, #tpu.memory_space<vmem>>, %arg3: memref<1x7xf32, #tpu.memory_space<vmem>>, %arg4: memref<2x2x2x32x32xf32, #tpu.memory_space<vmem>>, %arg5: memref<2x7xf32, #tpu.memory_space<vmem>>) attributes {dimension_semantics = [#tpu.dimension_semantics<parallel>], iteration_bounds = array<i64: 1>, scalar_prefetch = 0 : i64, scratch_operands = 0 : i64, tpu.core_type = #tpu.core_type<tc>, window_params = [{pipeline_mode = #tpu.pipeline_mode<synchronous>, transform_indices = @transform_0, window_bounds = array<i64: 10, 62>}, {pipeline_mode = #tpu.pipeline_mode<synchronous>, transform_indices = @transform_1, window_bounds = array<i64: 7, 31, 62>}, {pipeline_mode = #tpu.pipeline_mode<synchronous>, transform_indices = @transform_2, window_bounds = array<i64: 1, 7>}, {transform_indices = @transform_3, window_bounds = array<i64: 2, 2, 2, 32, 32>}, {transform_indices = @transform_4, window_bounds = array<i64: 2, 7>}]} {
    %c0 = arith.constant 0 : index
    %c0_0 = arith.constant 0 : index
    %0 = vector.load %arg1[%c0, %c0_0] : memref<10x62xf32, #tpu.memory_space<vmem>>, vector<10x62xf32>
    %1 = vector.extract_strided_slice %0 {offsets = [0, 0], sizes = [1, 62], strides = [1, 1]} : vector<10x62xf32> to vector<1x62xf32>
    %2 = vector.shape_cast %1 : vector<1x62xf32> to vector<62xf32>
    %3 = vector.shape_cast %2 : vector<62xf32> to vector<1x1x62xf32>
    %4 = vector.broadcast %3 : vector<1x1x62xf32> to vector<1x31x62xf32>
    %5 = vector.extract_strided_slice %0 {offsets = [1, 0], sizes = [1, 62], strides = [1, 1]} : vector<10x62xf32> to vector<1x62xf32>
    %6 = vector.shape_cast %5 : vector<1x62xf32> to vector<62xf32>
    %7 = vector.shape_cast %6 : vector<62xf32> to vector<1x1x62xf32>
    %8 = vector.broadcast %7 : vector<1x1x62xf32> to vector<1x31x62xf32>
    %9 = vector.extract_strided_slice %0 {offsets = [2, 0], sizes = [1, 62], strides = [1, 1]} : vector<10x62xf32> to vector<1x62xf32>
    %10 = vector.shape_cast %9 : vector<1x62xf32> to vector<62xf32>
    %11 = vector.shape_cast %10 : vector<62xf32> to vector<1x1x62xf32>
    %12 = vector.broadcast %11 : vector<1x1x62xf32> to vector<1x31x62xf32>
    %13 = vector.extract_strided_slice %0 {offsets = [3, 0], sizes = [1, 62], strides = [1, 1]} : vector<10x62xf32> to vector<1x62xf32>
    %14 = vector.shape_cast %13 : vector<1x62xf32> to vector<62xf32>
    %15 = vector.shape_cast %14 : vector<62xf32> to vector<1x1x62xf32>
    %16 = vector.broadcast %15 : vector<1x1x62xf32> to vector<1x31x62xf32>
    %17 = vector.extract_strided_slice %0 {offsets = [4, 0], sizes = [1, 62], strides = [1, 1]} : vector<10x62xf32> to vector<1x62xf32>
    %18 = vector.shape_cast %17 : vector<1x62xf32> to vector<62xf32>
    %19 = vector.shape_cast %18 : vector<62xf32> to vector<1x1x62xf32>
    %20 = vector.broadcast %19 : vector<1x1x62xf32> to vector<1x31x62xf32>
    %21 = vector.extract_strided_slice %0 {offsets = [5, 0], sizes = [1, 62], strides = [1, 1]} : vector<10x62xf32> to vector<1x62xf32>
    %22 = vector.shape_cast %21 : vector<1x62xf32> to vector<62xf32>
    %23 = vector.shape_cast %22 : vector<62xf32> to vector<1x1x62xf32>
    %24 = vector.broadcast %23 : vector<1x1x62xf32> to vector<1x31x62xf32>
    %25 = vector.extract_strided_slice %0 {offsets = [6, 0], sizes = [1, 62], strides = [1, 1]} : vector<10x62xf32> to vector<1x62xf32>
    %26 = vector.shape_cast %25 : vector<1x62xf32> to vector<62xf32>
    %27 = vector.shape_cast %26 : vector<62xf32> to vector<1x1x62xf32>
    %28 = vector.broadcast %27 : vector<1x1x62xf32> to vector<1x31x62xf32>
    %29 = vector.extract_strided_slice %0 {offsets = [7, 0], sizes = [1, 62], strides = [1, 1]} : vector<10x62xf32> to vector<1x62xf32>
    %30 = vector.shape_cast %29 : vector<1x62xf32> to vector<62xf32>
    %31 = vector.shape_cast %30 : vector<62xf32> to vector<1x1x62xf32>
    %32 = vector.broadcast %31 : vector<1x1x62xf32> to vector<1x31x62xf32>
    %33 = vector.extract_strided_slice %0 {offsets = [8, 0], sizes = [1, 62], strides = [1, 1]} : vector<10x62xf32> to vector<1x62xf32>
    %34 = vector.shape_cast %33 : vector<1x62xf32> to vector<62xf32>
    %35 = vector.shape_cast %34 : vector<62xf32> to vector<1x1x62xf32>
    %36 = vector.broadcast %35 : vector<1x1x62xf32> to vector<1x31x62xf32>
    %37 = vector.extract_strided_slice %0 {offsets = [9, 0], sizes = [1, 62], strides = [1, 1]} : vector<10x62xf32> to vector<1x62xf32>
    %38 = vector.shape_cast %37 : vector<1x62xf32> to vector<62xf32>
    %39 = vector.shape_cast %38 : vector<62xf32> to vector<1x1x62xf32>
    %40 = vector.broadcast %39 : vector<1x1x62xf32> to vector<1x31x62xf32>
    %c0_1 = arith.constant 0 : index
    %c0_2 = arith.constant 0 : index
    %c0_3 = arith.constant 0 : index
    %c0_4 = arith.constant 0 : index
    %c0_5 = arith.constant 0 : index
    %41 = vector.load %arg4[%c0_1, %c0_2, %c0_3, %c0_4, %c0_5] : memref<2x2x2x32x32xf32, #tpu.memory_space<vmem>>, vector<2x1x1x32x32xf32>
    %42 = vector.shape_cast %41 : vector<2x1x1x32x32xf32> to vector<2x32x32xf32>
    %43 = vector.extract_strided_slice %42 {offsets = [0, 0, 0], sizes = [2, 31, 31], strides = [1, 1, 1]} : vector<2x32x32xf32> to vector<2x31x31xf32>
    %44 = tpu.concatenate %43, %43 in 2 : vector<2x31x31xf32>, vector<2x31x31xf32> -> vector<2x31x62xf32>
    %45 = vector.extract_strided_slice %42 {offsets = [0, 0, 1], sizes = [2, 31, 31], strides = [1, 1, 1]} : vector<2x32x32xf32> to vector<2x31x31xf32>
    %46 = tpu.concatenate %45, %45 in 2 : vector<2x31x31xf32>, vector<2x31x31xf32> -> vector<2x31x62xf32>
    %47 = vector.extract_strided_slice %42 {offsets = [0, 1, 0], sizes = [2, 31, 31], strides = [1, 1, 1]} : vector<2x32x32xf32> to vector<2x31x31xf32>
    %48 = tpu.concatenate %47, %47 in 2 : vector<2x31x31xf32>, vector<2x31x31xf32> -> vector<2x31x62xf32>
    %49 = vector.extract_strided_slice %42 {offsets = [0, 1, 1], sizes = [2, 31, 31], strides = [1, 1, 1]} : vector<2x32x32xf32> to vector<2x31x31xf32>
    %50 = tpu.concatenate %49, %49 in 2 : vector<2x31x31xf32>, vector<2x31x31xf32> -> vector<2x31x62xf32>
    %c0_6 = arith.constant 0 : index
    %c0_7 = arith.constant 0 : index
    %c1 = arith.constant 1 : index
    %c0_8 = arith.constant 0 : index
    %c0_9 = arith.constant 0 : index
    %51 = vector.load %arg4[%c0_6, %c0_7, %c1, %c0_8, %c0_9] : memref<2x2x2x32x32xf32, #tpu.memory_space<vmem>>, vector<2x1x1x32x32xf32>
    %52 = vector.shape_cast %51 : vector<2x1x1x32x32xf32> to vector<2x32x32xf32>
    %53 = vector.extract_strided_slice %52 {offsets = [0, 0, 0], sizes = [2, 31, 31], strides = [1, 1, 1]} : vector<2x32x32xf32> to vector<2x31x31xf32>
    %54 = tpu.concatenate %53, %53 in 2 : vector<2x31x31xf32>, vector<2x31x31xf32> -> vector<2x31x62xf32>
    %55 = vector.extract_strided_slice %52 {offsets = [0, 0, 1], sizes = [2, 31, 31], strides = [1, 1, 1]} : vector<2x32x32xf32> to vector<2x31x31xf32>
    %56 = tpu.concatenate %55, %55 in 2 : vector<2x31x31xf32>, vector<2x31x31xf32> -> vector<2x31x62xf32>
    %57 = vector.extract_strided_slice %52 {offsets = [0, 1, 0], sizes = [2, 31, 31], strides = [1, 1, 1]} : vector<2x32x32xf32> to vector<2x31x31xf32>
    %58 = tpu.concatenate %57, %57 in 2 : vector<2x31x31xf32>, vector<2x31x31xf32> -> vector<2x31x62xf32>
    %59 = vector.extract_strided_slice %52 {offsets = [0, 1, 1], sizes = [2, 31, 31], strides = [1, 1, 1]} : vector<2x32x32xf32> to vector<2x31x31xf32>
    %60 = tpu.concatenate %59, %59 in 2 : vector<2x31x31xf32>, vector<2x31x31xf32> -> vector<2x31x62xf32>
    %c0_10 = arith.constant 0 : index
    %c1_11 = arith.constant 1 : index
    %c0_12 = arith.constant 0 : index
    %c0_13 = arith.constant 0 : index
    %c0_14 = arith.constant 0 : index
    %61 = vector.load %arg4[%c0_10, %c1_11, %c0_12, %c0_13, %c0_14] : memref<2x2x2x32x32xf32, #tpu.memory_space<vmem>>, vector<2x1x1x32x32xf32>
    %62 = vector.shape_cast %61 : vector<2x1x1x32x32xf32> to vector<2x32x32xf32>
    %63 = vector.extract_strided_slice %62 {offsets = [0, 0, 0], sizes = [2, 31, 31], strides = [1, 1, 1]} : vector<2x32x32xf32> to vector<2x31x31xf32>
    %64 = tpu.concatenate %63, %63 in 2 : vector<2x31x31xf32>, vector<2x31x31xf32> -> vector<2x31x62xf32>
    %65 = vector.extract_strided_slice %62 {offsets = [0, 0, 1], sizes = [2, 31, 31], strides = [1, 1, 1]} : vector<2x32x32xf32> to vector<2x31x31xf32>
    %66 = tpu.concatenate %65, %65 in 2 : vector<2x31x31xf32>, vector<2x31x31xf32> -> vector<2x31x62xf32>
    %67 = vector.extract_strided_slice %62 {offsets = [0, 1, 0], sizes = [2, 31, 31], strides = [1, 1, 1]} : vector<2x32x32xf32> to vector<2x31x31xf32>
    %68 = tpu.concatenate %67, %67 in 2 : vector<2x31x31xf32>, vector<2x31x31xf32> -> vector<2x31x62xf32>
    %69 = vector.extract_strided_slice %62 {offsets = [0, 1, 1], sizes = [2, 31, 31], strides = [1, 1, 1]} : vector<2x32x32xf32> to vector<2x31x31xf32>
    %70 = tpu.concatenate %69, %69 in 2 : vector<2x31x31xf32>, vector<2x31x31xf32> -> vector<2x31x62xf32>
    %c0_15 = arith.constant 0 : index
    %c1_16 = arith.constant 1 : index
    %c1_17 = arith.constant 1 : index
    %c0_18 = arith.constant 0 : index
    %c0_19 = arith.constant 0 : index
    %71 = vector.load %arg4[%c0_15, %c1_16, %c1_17, %c0_18, %c0_19] : memref<2x2x2x32x32xf32, #tpu.memory_space<vmem>>, vector<2x1x1x32x32xf32>
    %72 = vector.shape_cast %71 : vector<2x1x1x32x32xf32> to vector<2x32x32xf32>
    %73 = vector.extract_strided_slice %72 {offsets = [0, 0, 0], sizes = [2, 31, 31], strides = [1, 1, 1]} : vector<2x32x32xf32> to vector<2x31x31xf32>
    %74 = tpu.concatenate %73, %73 in 2 : vector<2x31x31xf32>, vector<2x31x31xf32> -> vector<2x31x62xf32>
    %75 = vector.extract_strided_slice %72 {offsets = [0, 0, 1], sizes = [2, 31, 31], strides = [1, 1, 1]} : vector<2x32x32xf32> to vector<2x31x31xf32>
    %76 = tpu.concatenate %75, %75 in 2 : vector<2x31x31xf32>, vector<2x31x31xf32> -> vector<2x31x62xf32>
    %77 = vector.extract_strided_slice %72 {offsets = [0, 1, 0], sizes = [2, 31, 31], strides = [1, 1, 1]} : vector<2x32x32xf32> to vector<2x31x31xf32>
    %78 = tpu.concatenate %77, %77 in 2 : vector<2x31x31xf32>, vector<2x31x31xf32> -> vector<2x31x62xf32>
    %79 = vector.extract_strided_slice %72 {offsets = [0, 1, 1], sizes = [2, 31, 31], strides = [1, 1, 1]} : vector<2x32x32xf32> to vector<2x31x31xf32>
    %80 = tpu.concatenate %79, %79 in 2 : vector<2x31x31xf32>, vector<2x31x31xf32> -> vector<2x31x62xf32>
    %81 = vector.broadcast %4 : vector<1x31x62xf32> to vector<2x31x62xf32>
    %82 = arith.mulf %81, %44 : vector<2x31x62xf32>
    %83 = vector.broadcast %8 : vector<1x31x62xf32> to vector<2x31x62xf32>
    %84 = arith.mulf %83, %54 : vector<2x31x62xf32>
    %85 = arith.addf %82, %84 : vector<2x31x62xf32>
    %86 = vector.broadcast %12 : vector<1x31x62xf32> to vector<2x31x62xf32>
    %87 = arith.mulf %86, %46 : vector<2x31x62xf32>
    %88 = arith.addf %85, %87 : vector<2x31x62xf32>
    %89 = vector.broadcast %16 : vector<1x31x62xf32> to vector<2x31x62xf32>
    %90 = arith.mulf %89, %64 : vector<2x31x62xf32>
    %91 = arith.addf %88, %90 : vector<2x31x62xf32>
    %92 = vector.broadcast %20 : vector<1x31x62xf32> to vector<2x31x62xf32>
    %93 = arith.mulf %92, %74 : vector<2x31x62xf32>
    %94 = arith.addf %91, %93 : vector<2x31x62xf32>
    %95 = vector.broadcast %24 : vector<1x31x62xf32> to vector<2x31x62xf32>
    %96 = arith.mulf %95, %66 : vector<2x31x62xf32>
    %97 = arith.addf %94, %96 : vector<2x31x62xf32>
    %98 = vector.broadcast %28 : vector<1x31x62xf32> to vector<2x31x62xf32>
    %99 = arith.mulf %98, %48 : vector<2x31x62xf32>
    %100 = arith.addf %97, %99 : vector<2x31x62xf32>
    %101 = vector.broadcast %32 : vector<1x31x62xf32> to vector<2x31x62xf32>
    %102 = arith.mulf %101, %58 : vector<2x31x62xf32>
    %103 = arith.addf %100, %102 : vector<2x31x62xf32>
    %104 = vector.broadcast %36 : vector<1x31x62xf32> to vector<2x31x62xf32>
    %105 = arith.mulf %104, %50 : vector<2x31x62xf32>
    %106 = arith.addf %103, %105 : vector<2x31x62xf32>
    %107 = vector.broadcast %4 : vector<1x31x62xf32> to vector<2x31x62xf32>
    %108 = arith.mulf %107, %54 : vector<2x31x62xf32>
    %109 = vector.broadcast %8 : vector<1x31x62xf32> to vector<2x31x62xf32>
    %110 = arith.mulf %109, %46 : vector<2x31x62xf32>
    %111 = arith.addf %108, %110 : vector<2x31x62xf32>
    %112 = vector.broadcast %12 : vector<1x31x62xf32> to vector<2x31x62xf32>
    %113 = arith.mulf %112, %56 : vector<2x31x62xf32>
    %114 = arith.addf %111, %113 : vector<2x31x62xf32>
    %115 = vector.broadcast %16 : vector<1x31x62xf32> to vector<2x31x62xf32>
    %116 = arith.mulf %115, %74 : vector<2x31x62xf32>
    %117 = arith.addf %114, %116 : vector<2x31x62xf32>
    %118 = vector.broadcast %20 : vector<1x31x62xf32> to vector<2x31x62xf32>
    %119 = arith.mulf %118, %66 : vector<2x31x62xf32>
    %120 = arith.addf %117, %119 : vector<2x31x62xf32>
    %121 = vector.broadcast %24 : vector<1x31x62xf32> to vector<2x31x62xf32>
    %122 = arith.mulf %121, %76 : vector<2x31x62xf32>
    %123 = arith.addf %120, %122 : vector<2x31x62xf32>
    %124 = vector.broadcast %28 : vector<1x31x62xf32> to vector<2x31x62xf32>
    %125 = arith.mulf %124, %58 : vector<2x31x62xf32>
    %126 = arith.addf %123, %125 : vector<2x31x62xf32>
    %127 = vector.broadcast %32 : vector<1x31x62xf32> to vector<2x31x62xf32>
    %128 = arith.mulf %127, %50 : vector<2x31x62xf32>
    %129 = arith.addf %126, %128 : vector<2x31x62xf32>
    %130 = vector.broadcast %36 : vector<1x31x62xf32> to vector<2x31x62xf32>
    %131 = arith.mulf %130, %60 : vector<2x31x62xf32>
    %132 = arith.addf %129, %131 : vector<2x31x62xf32>
    %133 = arith.maximumf %106, %132 : vector<2x31x62xf32>
    %134 = vector.broadcast %4 : vector<1x31x62xf32> to vector<2x31x62xf32>
    %135 = arith.mulf %134, %64 : vector<2x31x62xf32>
    %136 = vector.broadcast %8 : vector<1x31x62xf32> to vector<2x31x62xf32>
    %137 = arith.mulf %136, %74 : vector<2x31x62xf32>
    %138 = arith.addf %135, %137 : vector<2x31x62xf32>
    %139 = vector.broadcast %12 : vector<1x31x62xf32> to vector<2x31x62xf32>
    %140 = arith.mulf %139, %66 : vector<2x31x62xf32>
    %141 = arith.addf %138, %140 : vector<2x31x62xf32>
    %142 = vector.broadcast %16 : vector<1x31x62xf32> to vector<2x31x62xf32>
    %143 = arith.mulf %142, %48 : vector<2x31x62xf32>
    %144 = arith.addf %141, %143 : vector<2x31x62xf32>
    %145 = vector.broadcast %20 : vector<1x31x62xf32> to vector<2x31x62xf32>
    %146 = arith.mulf %145, %58 : vector<2x31x62xf32>
    %147 = arith.addf %144, %146 : vector<2x31x62xf32>
    %148 = vector.broadcast %24 : vector<1x31x62xf32> to vector<2x31x62xf32>
    %149 = arith.mulf %148, %50 : vector<2x31x62xf32>
    %150 = arith.addf %147, %149 : vector<2x31x62xf32>
    %151 = vector.broadcast %28 : vector<1x31x62xf32> to vector<2x31x62xf32>
    %152 = arith.mulf %151, %68 : vector<2x31x62xf32>
    %153 = arith.addf %150, %152 : vector<2x31x62xf32>
    %154 = vector.broadcast %32 : vector<1x31x62xf32> to vector<2x31x62xf32>
    %155 = arith.mulf %154, %78 : vector<2x31x62xf32>
    %156 = arith.addf %153, %155 : vector<2x31x62xf32>
    %157 = vector.broadcast %36 : vector<1x31x62xf32> to vector<2x31x62xf32>
    %158 = arith.mulf %157, %70 : vector<2x31x62xf32>
    %159 = arith.addf %156, %158 : vector<2x31x62xf32>
    %160 = arith.maximumf %133, %159 : vector<2x31x62xf32>
    %161 = vector.broadcast %4 : vector<1x31x62xf32> to vector<2x31x62xf32>
    %162 = arith.mulf %161, %74 : vector<2x31x62xf32>
    %163 = vector.broadcast %8 : vector<1x31x62xf32> to vector<2x31x62xf32>
    %164 = arith.mulf %163, %66 : vector<2x31x62xf32>
    %165 = arith.addf %162, %164 : vector<2x31x62xf32>
    %166 = vector.broadcast %12 : vector<1x31x62xf32> to vector<2x31x62xf32>
    %167 = arith.mulf %166, %76 : vector<2x31x62xf32>
    %168 = arith.addf %165, %167 : vector<2x31x62xf32>
    %169 = vector.broadcast %16 : vector<1x31x62xf32> to vector<2x31x62xf32>
    %170 = arith.mulf %169, %58 : vector<2x31x62xf32>
    %171 = arith.addf %168, %170 : vector<2x31x62xf32>
    %172 = vector.broadcast %20 : vector<1x31x62xf32> to vector<2x31x62xf32>
    %173 = arith.mulf %172, %50 : vector<2x31x62xf32>
    %174 = arith.addf %171, %173 : vector<2x31x62xf32>
    %175 = vector.broadcast %24 : vector<1x31x62xf32> to vector<2x31x62xf32>
    %176 = arith.mulf %175, %60 : vector<2x31x62xf32>
    %177 = arith.addf %174, %176 : vector<2x31x62xf32>
    %178 = vector.broadcast %28 : vector<1x31x62xf32> to vector<2x31x62xf32>
    %179 = arith.mulf %178, %78 : vector<2x31x62xf32>
    %180 = arith.addf %177, %179 : vector<2x31x62xf32>
    %181 = vector.broadcast %32 : vector<1x31x62xf32> to vector<2x31x62xf32>
    %182 = arith.mulf %181, %70 : vector<2x31x62xf32>
    %183 = arith.addf %180, %182 : vector<2x31x62xf32>
    %184 = vector.broadcast %36 : vector<1x31x62xf32> to vector<2x31x62xf32>
    %185 = arith.mulf %184, %80 : vector<2x31x62xf32>
    %186 = arith.addf %183, %185 : vector<2x31x62xf32>
    %187 = arith.maximumf %160, %186 : vector<2x31x62xf32>
    %188 = vector.broadcast %40 : vector<1x31x62xf32> to vector<2x31x62xf32>
    %189 = arith.addf %187, %188 : vector<2x31x62xf32>
    %cst = arith.constant 0.000000e+00 : f32
    %190 = vector.broadcast %cst : f32 to vector<2x31x62xf32>
    %191 = arith.maximumf %189, %190 : vector<2x31x62xf32>
    %c0_20 = arith.constant 0 : index
    %c0_21 = arith.constant 0 : index
    %c0_22 = arith.constant 0 : index
    %192 = vector.load %arg2[%c0_20, %c0_21, %c0_22] : memref<7x31x62xf32, #tpu.memory_space<vmem>>, vector<7x31x62xf32>
    %193 = vector.extract_strided_slice %192 {offsets = [0, 0, 0], sizes = [1, 31, 62], strides = [1, 1, 1]} : vector<7x31x62xf32> to vector<1x31x62xf32>
    %194 = vector.shape_cast %193 : vector<1x31x62xf32> to vector<31x62xf32>
    %195 = vector.shape_cast %194 : vector<31x62xf32> to vector<1x31x62xf32>
    %196 = vector.broadcast %195 : vector<1x31x62xf32> to vector<2x31x62xf32>
    %197 = arith.mulf %191, %196 : vector<2x31x62xf32>
    %cst_23 = arith.constant dense<0.000000e+00> : vector<2x31xf32>
    %198 = vector.multi_reduction <add>, %197, %cst_23 [2] : vector<2x31x62xf32> to vector<2x31xf32>
    %cst_24 = arith.constant dense<0.000000e+00> : vector<2xf32>
    %199 = vector.multi_reduction <add>, %198, %cst_24 [1] : vector<2x31xf32> to vector<2xf32>
    %200 = vector.shape_cast %199 : vector<2xf32> to vector<2x1xf32>
    %201 = vector.extract_strided_slice %192 {offsets = [1, 0, 0], sizes = [1, 31, 62], strides = [1, 1, 1]} : vector<7x31x62xf32> to vector<1x31x62xf32>
    %202 = vector.shape_cast %201 : vector<1x31x62xf32> to vector<31x62xf32>
    %203 = vector.shape_cast %202 : vector<31x62xf32> to vector<1x31x62xf32>
    %204 = vector.broadcast %203 : vector<1x31x62xf32> to vector<2x31x62xf32>
    %205 = arith.mulf %191, %204 : vector<2x31x62xf32>
    %cst_25 = arith.constant dense<0.000000e+00> : vector<2x31xf32>
    %206 = vector.multi_reduction <add>, %205, %cst_25 [2] : vector<2x31x62xf32> to vector<2x31xf32>
    %cst_26 = arith.constant dense<0.000000e+00> : vector<2xf32>
    %207 = vector.multi_reduction <add>, %206, %cst_26 [1] : vector<2x31xf32> to vector<2xf32>
    %208 = vector.shape_cast %207 : vector<2xf32> to vector<2x1xf32>
    %209 = vector.extract_strided_slice %192 {offsets = [2, 0, 0], sizes = [1, 31, 62], strides = [1, 1, 1]} : vector<7x31x62xf32> to vector<1x31x62xf32>
    %210 = vector.shape_cast %209 : vector<1x31x62xf32> to vector<31x62xf32>
    %211 = vector.shape_cast %210 : vector<31x62xf32> to vector<1x31x62xf32>
    %212 = vector.broadcast %211 : vector<1x31x62xf32> to vector<2x31x62xf32>
    %213 = arith.mulf %191, %212 : vector<2x31x62xf32>
    %cst_27 = arith.constant dense<0.000000e+00> : vector<2x31xf32>
    %214 = vector.multi_reduction <add>, %213, %cst_27 [2] : vector<2x31x62xf32> to vector<2x31xf32>
    %cst_28 = arith.constant dense<0.000000e+00> : vector<2xf32>
    %215 = vector.multi_reduction <add>, %214, %cst_28 [1] : vector<2x31xf32> to vector<2xf32>
    %216 = vector.shape_cast %215 : vector<2xf32> to vector<2x1xf32>
    %217 = vector.extract_strided_slice %192 {offsets = [3, 0, 0], sizes = [1, 31, 62], strides = [1, 1, 1]} : vector<7x31x62xf32> to vector<1x31x62xf32>
    %218 = vector.shape_cast %217 : vector<1x31x62xf32> to vector<31x62xf32>
    %219 = vector.shape_cast %218 : vector<31x62xf32> to vector<1x31x62xf32>
    %220 = vector.broadcast %219 : vector<1x31x62xf32> to vector<2x31x62xf32>
    %221 = arith.mulf %191, %220 : vector<2x31x62xf32>
    %cst_29 = arith.constant dense<0.000000e+00> : vector<2x31xf32>
    %222 = vector.multi_reduction <add>, %221, %cst_29 [2] : vector<2x31x62xf32> to vector<2x31xf32>
    %cst_30 = arith.constant dense<0.000000e+00> : vector<2xf32>
    %223 = vector.multi_reduction <add>, %222, %cst_30 [1] : vector<2x31xf32> to vector<2xf32>
    %224 = vector.shape_cast %223 : vector<2xf32> to vector<2x1xf32>
    %225 = vector.extract_strided_slice %192 {offsets = [4, 0, 0], sizes = [1, 31, 62], strides = [1, 1, 1]} : vector<7x31x62xf32> to vector<1x31x62xf32>
    %226 = vector.shape_cast %225 : vector<1x31x62xf32> to vector<31x62xf32>
    %227 = vector.shape_cast %226 : vector<31x62xf32> to vector<1x31x62xf32>
    %228 = vector.broadcast %227 : vector<1x31x62xf32> to vector<2x31x62xf32>
    %229 = arith.mulf %191, %228 : vector<2x31x62xf32>
    %cst_31 = arith.constant dense<0.000000e+00> : vector<2x31xf32>
    %230 = vector.multi_reduction <add>, %229, %cst_31 [2] : vector<2x31x62xf32> to vector<2x31xf32>
    %cst_32 = arith.constant dense<0.000000e+00> : vector<2xf32>
    %231 = vector.multi_reduction <add>, %230, %cst_32 [1] : vector<2x31xf32> to vector<2xf32>
    %232 = vector.shape_cast %231 : vector<2xf32> to vector<2x1xf32>
    %233 = vector.extract_strided_slice %192 {offsets = [5, 0, 0], sizes = [1, 31, 62], strides = [1, 1, 1]} : vector<7x31x62xf32> to vector<1x31x62xf32>
    %234 = vector.shape_cast %233 : vector<1x31x62xf32> to vector<31x62xf32>
    %235 = vector.shape_cast %234 : vector<31x62xf32> to vector<1x31x62xf32>
    %236 = vector.broadcast %235 : vector<1x31x62xf32> to vector<2x31x62xf32>
    %237 = arith.mulf %191, %236 : vector<2x31x62xf32>
    %cst_33 = arith.constant dense<0.000000e+00> : vector<2x31xf32>
    %238 = vector.multi_reduction <add>, %237, %cst_33 [2] : vector<2x31x62xf32> to vector<2x31xf32>
    %cst_34 = arith.constant dense<0.000000e+00> : vector<2xf32>
    %239 = vector.multi_reduction <add>, %238, %cst_34 [1] : vector<2x31xf32> to vector<2xf32>
    %240 = vector.shape_cast %239 : vector<2xf32> to vector<2x1xf32>
    %241 = vector.extract_strided_slice %192 {offsets = [6, 0, 0], sizes = [1, 31, 62], strides = [1, 1, 1]} : vector<7x31x62xf32> to vector<1x31x62xf32>
    %242 = vector.shape_cast %241 : vector<1x31x62xf32> to vector<31x62xf32>
    %243 = vector.shape_cast %242 : vector<31x62xf32> to vector<1x31x62xf32>
    %244 = vector.broadcast %243 : vector<1x31x62xf32> to vector<2x31x62xf32>
    %245 = arith.mulf %191, %244 : vector<2x31x62xf32>
    %cst_35 = arith.constant dense<0.000000e+00> : vector<2x31xf32>
    %246 = vector.multi_reduction <add>, %245, %cst_35 [2] : vector<2x31x62xf32> to vector<2x31xf32>
    %cst_36 = arith.constant dense<0.000000e+00> : vector<2xf32>
    %247 = vector.multi_reduction <add>, %246, %cst_36 [1] : vector<2x31xf32> to vector<2xf32>
    %248 = vector.shape_cast %247 : vector<2xf32> to vector<2x1xf32>
    %249 = tpu.concatenate %200, %208, %216, %224, %232, %240, %248 in 1 : vector<2x1xf32>, vector<2x1xf32>, vector<2x1xf32>, vector<2x1xf32>, vector<2x1xf32>, vector<2x1xf32>, vector<2x1xf32> -> vector<2x7xf32>
    %c0_37 = arith.constant 0 : index
    %c0_38 = arith.constant 0 : index
    %250 = vector.load %arg3[%c0_37, %c0_38] : memref<1x7xf32, #tpu.memory_space<vmem>>, vector<1x7xf32>
    %251 = vector.broadcast %250 : vector<1x7xf32> to vector<2x7xf32>
    %252 = arith.addf %249, %251 : vector<2x7xf32>
    %cst_39 = arith.constant dense<0xFF800000> : vector<2xf32>
    %253 = vector.multi_reduction <maximumf>, %252, %cst_39 [1] : vector<2x7xf32> to vector<2xf32>
    %254 = vector.shape_cast %253 : vector<2xf32> to vector<2x1xf32>
    %255 = vector.broadcast %254 : vector<2x1xf32> to vector<2x7xf32>
    %256 = arith.subf %252, %255 : vector<2x7xf32>
    %257 = math.exp %256 : vector<2x7xf32>
    %cst_40 = arith.constant dense<0.000000e+00> : vector<2xf32>
    %258 = vector.multi_reduction <add>, %257, %cst_40 [1] : vector<2x7xf32> to vector<2xf32>
    %259 = vector.shape_cast %258 : vector<2xf32> to vector<2x1xf32>
    %260 = vector.broadcast %259 : vector<2x1xf32> to vector<2x7xf32>
    %261 = arith.divf %257, %260 : vector<2x7xf32>
    %c0_41 = arith.constant 0 : index
    %c0_42 = arith.constant 0 : index
    %262 = vector.load %arg5[%c0_41, %c0_42] : memref<2x7xf32, #tpu.memory_space<vmem>>, vector<2x7xf32>
    tpu.vector_store %arg5[%c0_41, %c0_42], %261 {strides = array<i32>} : memref<2x7xf32, #tpu.memory_space<vmem>>, vector<2x7xf32>,
    return
  }
  func.func @transform_0(%arg0: i32) -> (i32, i32) {
    %c0_i32 = arith.constant 0 : i32
    %c0_i32_0 = arith.constant 0 : i32
    %c0_i32_1 = arith.constant 0 : i32
    return %c0_i32, %c0_i32_0 : i32, i32
  }
  func.func @transform_1(%arg0: i32) -> (i32, i32, i32) {
    %c0_i32 = arith.constant 0 : i32
    %c0_i32_0 = arith.constant 0 : i32
    %c0_i32_1 = arith.constant 0 : i32
    %c0_i32_2 = arith.constant 0 : i32
    return %c0_i32, %c0_i32_0, %c0_i32_1 : i32, i32, i32
  }
  func.func @transform_2(%arg0: i32) -> (i32, i32) {
    %c0_i32 = arith.constant 0 : i32
    %c0_i32_0 = arith.constant 0 : i32
    %c0_i32_1 = arith.constant 0 : i32
    return %c0_i32, %c0_i32_0 : i32, i32
  }
  func.func @transform_3(%arg0: i32) -> (i32, i32, i32, i32, i32) {
    %c0_i32 = arith.constant 0 : i32
    %c0_i32_0 = arith.constant 0 : i32
    %c0_i32_1 = arith.constant 0 : i32
    %c0_i32_2 = arith.constant 0 : i32
    %c0_i32_3 = arith.constant 0 : i32
    return %arg0, %c0_i32, %c0_i32_0, %c0_i32_1, %c0_i32_2 : i32, i32, i32, i32, i32
  }
  func.func @transform_4(%arg0: i32) -> (i32, i32) {
    %c0_i32 = arith.constant 0 : i32
    %c0_i32_0 = arith.constant 0 : i32
    return %arg0, %c0_i32 : i32, i32
  }
}

</mosaic_0001>

<llo_original>
// kernel: tpu_custom_call.1
$region0: #{tpu_custom_call.1}
  #allocation0 [shape = 'u32[]', space=smem, size = 0x4, offset = 0x4, fixed_abs, tag = 'smem constant byte address 0x4 - core index']
  #allocation1 [shape = 'u32[144,128]{1,0:T(1,128)}', space=vmem, size = 0x12000, scoped, tag = 'internal scratch']
  %s0 = inlined_call_operand.hbm [shape: f32[10,62], index: 0, kind: input, shape index: {}]
  %s1 = inlined_call_operand.hbm [shape: f32[7,31,62], index: 1, kind: input, shape index: {}]
  %s2 = inlined_call_operand.vmem [shape: f32[1,7], index: 2, kind: input, shape index: {}]
  %s3 = inlined_call_operand.hbm [shape: f32[2,2,2,32,32], index: 3, kind: input, shape index: {}]
  %s4 = inlined_call_operand.hbm [shape: f32[2,7], index: 4, kind: output, shape index: {}]
  %s5 = sld [smem:[#allocation0]]
  $region38: #{tpu_custom_call.1} parent=0
    _
  %s7 = ssub.s32 1, %s5
  %s8 = scalar_select 0, %s7, %s5
  $region1: #{tpu_custom_call.1} parent=0
    #allocation2 [shape = 'u8[8192]{0}', space=vmem, size = 0x2000, scoped, tag = 'input window, operand 0, single buffered']
    #allocation3 [shape = 's32[1]{0}', space=sflag, size = 0x4, scoped, tag = 'scoped memory for tpu_custom_call.1']
    #allocation4 [shape = 's32[1]{0}', space=sflag, size = 0x4, scoped, tag = 'scoped memory for tpu_custom_call.1']
    #allocation5 [shape = 'u8[114688]{0}', space=vmem, size = 0x1c000, scoped, tag = 'input window, operand 1, single buffered']
    #allocation6 [shape = 's32[1]{0}', space=sflag, size = 0x4, scoped, tag = 'scoped memory for tpu_custom_call.1']
    #allocation7 [shape = 'u8[131072]{0}', space=vmem, size = 0x20000, scoped, tag = 'input window, operand 3, single buffered']
    #allocation8 [shape = 'u8[1024]{0}', space=vmem, size = 0x400, scoped, tag = 'output window, operand 0, single buffered']
    %9 = vsyncpa [#allocation3], 0
    %10 = vsyncpa [#allocation6], 0
    %11 = vsyncpa [#allocation4], 0
    // Predicated region
    $region2: #{tpu_custom_call.1} parent=1 // pred_check
      _
    $region3: #{tpu_custom_call.1} parent=1 // pred_check_branch
      %13 = sbr.rel (0) target = $region5
    $region4: #{tpu_custom_call.1} parent=1 // pred_region
      %s15 = ssub.s32 256, 256
      %16 = vsyncadd [#allocation3], %s15
      %s17 = sshll.u32 [#allocation2], 4
      %s18 = int_to_ptr.vmem [resolvable:$true] %s17
      %23 = dma.hbm_to_vmem [thread:$0]  %s0, 256, %s18, [#allocation3], 128, 128, 8
    $region5: #{tpu_custom_call.1} parent=1 // pred_fallthru
      _
    // Predicated region
    $region6: #{tpu_custom_call.1} parent=1 // pred_check
      _
    $region7: #{tpu_custom_call.1} parent=1 // pred_check_branch
      %25 = sbr.rel (0) target = $region9
    $region8: #{tpu_custom_call.1} parent=1 // pred_region
      %s27 = ssub.s32 3584, 3584
      %28 = vsyncadd [#allocation6], %s27
      %s29 = sshll.u32 [#allocation5], 4
      %s30 = int_to_ptr.vmem [resolvable:$true] %s29
      %35 = dma.hbm_to_vmem [thread:$0]  %s1, 3584, %s30, [#allocation6], 128, 128, 8
    $region9: #{tpu_custom_call.1} parent=1 // pred_fallthru
      _
    // Predicated region
    $region10: #{tpu_custom_call.1} parent=1 // pred_check
      _
    $region11: #{tpu_custom_call.1} parent=1 // pred_check_branch
      %37 = sbr.rel (0) target = $region13
    $region12: #{tpu_custom_call.1} parent=1 // pred_region
      _
    $region13: #{tpu_custom_call.1} parent=1 // pred_fallthru
      _
    // Predicated region
    $region14: #{tpu_custom_call.1} parent=1 // pred_check
      _
    $region15: #{tpu_custom_call.1} parent=1 // pred_check_branch
      %39 = sbr.rel (0) target = $region17
    $region16: #{tpu_custom_call.1} parent=1 // pred_region
      %s41 = ssub.s32 4096, 4096
      %42 = vsyncadd [#allocation6], %s41
      %s43 = sshll.u32 [#allocation7], 4
      %s44 = int_to_ptr.vmem [resolvable:$true] %s43
      %49 = dma.hbm_to_vmem [thread:$0]  %s3, 4096, %s44, [#allocation6], 128, 128, 8
    $region17: #{tpu_custom_call.1} parent=1 // pred_fallthru
      _
    // Predicated region
    $region18: #{tpu_custom_call.1} parent=1 // pred_check
      _
    $region19: #{tpu_custom_call.1} parent=1 // pred_check_branch
      %51 = sbr.rel (0) target = $region21
    $region20: #{tpu_custom_call.1} parent=1 // pred_region
      %52 = dma.done [#allocation3], 256
    $region21: #{tpu_custom_call.1} parent=1 // pred_fallthru
      _
    // Predicated region
    $region22: #{tpu_custom_call.1} parent=1 // pred_check
      _
    $region23: #{tpu_custom_call.1} parent=1 // pred_check_branch
      %54 = sbr.rel (0) target = $region25
    $region24: #{tpu_custom_call.1} parent=1 // pred_region
      %55 = dma.done [#allocation6], 3584
    $region25: #{tpu_custom_call.1} parent=1 // pred_fallthru
      _
    // Predicated region
    $region26: #{tpu_custom_call.1} parent=1 // pred_check
      _
    $region27: #{tpu_custom_call.1} parent=1 // pred_check_branch
      %57 = sbr.rel (0) target = $region29
    $region28: #{tpu_custom_call.1} parent=1 // pred_region
      %58 = dma.done [#allocation6], 4096
    $region29: #{tpu_custom_call.1} parent=1 // pred_fallthru
      _
    %v59 = vld [vmem:[#allocation2] sm:$0xff]
    %v60 = vld [vmem:[#allocation2 + $0x8] sm:$0x3]
    %v61 = vld [vmem:[#allocation7] sm:$0xff]
    %v62 = vld [vmem:[#allocation7 + $0x8] sm:$0xff]
    %v63 = vld [vmem:[#allocation7 + $0x10] sm:$0xff]
    %v64 = vld [vmem:[#allocation7 + $0x18] sm:$0xff]
    %v65 = vld [vmem:[#allocation7 + $0x80] sm:$0xff]
    %v66 = vld [vmem:[#allocation7 + $0x88] sm:$0xff]
    %v67 = vld [vmem:[#allocation7 + $0x90] sm:$0xff]
    %v68 = vld [vmem:[#allocation7 + $0x98] sm:$0xff]
    %77 = vrot.lane.b32.xlu0 %v61, 31
    %v78 = vpop.permute.xlu0 %77
    %79 = vrot.lane.b32.xlu0 %v62, 31
    %v80 = vpop.permute.xlu0 %79
    %81 = vrot.lane.b32.xlu0 %v63, 31
    %v82 = vpop.permute.xlu0 %81
    %83 = vrot.lane.b32.xlu0 %v64, 31
    %v84 = vpop.permute.xlu0 %83
    %85 = vrot.lane.b32.xlu0 %v65, 31
    %v86 = vpop.permute.xlu0 %85
    %87 = vrot.lane.b32.xlu0 %v66, 31
    %v88 = vpop.permute.xlu0 %87
    %89 = vrot.lane.b32.xlu0 %v67, 31
    %v90 = vpop.permute.xlu0 %89
    %91 = vrot.lane.b32.xlu0 %v68, 31
    %v92 = vpop.permute.xlu0 %91
    %vm101 = vcmask 252928
    %v102 = vsel %vm101, %v61, %v78
    %v103 = vsel %vm101, %v62, %v80
    %v104 = vsel %vm101, %v63, %v82
    %v105 = vsel %vm101, %v64, %v84
    %v106 = vsel %vm101, %v65, %v86
    %v107 = vsel %vm101, %v66, %v88
    %v108 = vsel %vm101, %v67, %v90
    %v109 = vsel %vm101, %v68, %v92
    %110 = vrot.lane.b32.xlu0 %v61, 127
    %v111 = vpop.permute.xlu0 %110
    %112 = vrot.lane.b32.xlu0 %v62, 127
    %v113 = vpop.permute.xlu0 %112
    %114 = vrot.lane.b32.xlu0 %v63, 127
    %v115 = vpop.permute.xlu0 %114
    %116 = vrot.lane.b32.xlu0 %v64, 127
    %v117 = vpop.permute.xlu0 %116
    %118 = vrot.lane.b32.xlu0 %v65, 127
    %v119 = vpop.permute.xlu0 %118
    %120 = vrot.lane.b32.xlu0 %v66, 127
    %v121 = vpop.permute.xlu0 %120
    %122 = vrot.lane.b32.xlu0 %v67, 127
    %v123 = vpop.permute.xlu0 %122
    %124 = vrot.lane.b32.xlu0 %v68, 127
    %v125 = vpop.permute.xlu0 %124
    %134 = vrot.lane.b32.xlu0 %v61, 30
    %v135 = vpop.permute.xlu0 %134
    %136 = vrot.lane.b32.xlu0 %v62, 30
    %v137 = vpop.permute.xlu0 %136
    %138 = vrot.lane.b32.xlu0 %v63, 30
    %v139 = vpop.permute.xlu0 %138
    %140 = vrot.lane.b32.xlu0 %v64, 30
    %v141 = vpop.permute.xlu0 %140
    %142 = vrot.lane.b32.xlu0 %v65, 30
    %v143 = vpop.permute.xlu0 %142
    %144 = vrot.lane.b32.xlu0 %v66, 30
    %v145 = vpop.permute.xlu0 %144
    %146 = vrot.lane.b32.xlu0 %v67, 30
    %v147 = vpop.permute.xlu0 %146
    %148 = vrot.lane.b32.xlu0 %v68, 30
    %v149 = vpop.permute.xlu0 %148
    %v158 = vsel %vm101, %v111, %v135
    %v159 = vsel %vm101, %v113, %v137
    %v160 = vsel %vm101, %v115, %v139
    %v161 = vsel %vm101, %v117, %v141
    %v162 = vsel %vm101, %v119, %v143
    %v163 = vsel %vm101, %v121, %v145
    %v164 = vsel %vm101, %v123, %v147
    %v165 = vsel %vm101, %v125, %v149
    %s166 = scalar_lea.vmem [#allocation7], 32
    %v167 = vld [vmem:[%s166] sm:$0xff]
    %v168 = vld [vmem:[%s166 + $0x8] sm:$0xff]
    %v169 = vld [vmem:[%s166 + $0x10] sm:$0xff]
    %v170 = vld [vmem:[%s166 + $0x18] sm:$0xff]
    %v171 = vld [vmem:[%s166 + $0x80] sm:$0xff]
    %v172 = vld [vmem:[%s166 + $0x88] sm:$0xff]
    %v173 = vld [vmem:[%s166 + $0x90] sm:$0xff]
    %v174 = vld [vmem:[%s166 + $0x98] sm:$0xff]
    %183 = vrot.lane.b32.xlu0 %v167, 31
    %v184 = vpop.permute.xlu0 %183
    %185 = vrot.lane.b32.xlu0 %v168, 31
    %v186 = vpop.permute.xlu0 %185
    %187 = vrot.lane.b32.xlu0 %v169, 31
    %v188 = vpop.permute.xlu0 %187
    %189 = vrot.lane.b32.xlu0 %v170, 31
    %v190 = vpop.permute.xlu0 %189
    %191 = vrot.lane.b32.xlu0 %v171, 31
    %v192 = vpop.permute.xlu0 %191
    %193 = vrot.lane.b32.xlu0 %v172, 31
    %v194 = vpop.permute.xlu0 %193
    %195 = vrot.lane.b32.xlu0 %v173, 31
    %v196 = vpop.permute.xlu0 %195
    %197 = vrot.lane.b32.xlu0 %v174, 31
    %v198 = vpop.permute.xlu0 %197
    %v207 = vsel %vm101, %v167, %v184
    %v208 = vsel %vm101, %v168, %v186
    %v209 = vsel %vm101, %v169, %v188
    %v210 = vsel %vm101, %v170, %v190
    %v211 = vsel %vm101, %v171, %v192
    %v212 = vsel %vm101, %v172, %v194
    %v213 = vsel %vm101, %v173, %v196
    %v214 = vsel %vm101, %v174, %v198
    %215 = vrot.lane.b32.xlu0 %v167, 127
    %v216 = vpop.permute.xlu0 %215
    %217 = vrot.lane.b32.xlu0 %v168, 127
    %v218 = vpop.permute.xlu0 %217
    %219 = vrot.lane.b32.xlu0 %v169, 127
    %v220 = vpop.permute.xlu0 %219
    %221 = vrot.lane.b32.xlu0 %v170, 127
    %v222 = vpop.permute.xlu0 %221
    %223 = vrot.lane.b32.xlu0 %v171, 127
    %v224 = vpop.permute.xlu0 %223
    %225 = vrot.lane.b32.xlu0 %v172, 127
    %v226 = vpop.permute.xlu0 %225
    %227 = vrot.lane.b32.xlu0 %v173, 127
    %v228 = vpop.permute.xlu0 %227
    %229 = vrot.lane.b32.xlu0 %v174, 127
    %v230 = vpop.permute.xlu0 %229
    %239 = vrot.lane.b32.xlu0 %v167, 30
    %v240 = vpop.permute.xlu0 %239
    %241 = vrot.lane.b32.xlu0 %v168, 30
    %v242 = vpop.permute.xlu0 %241
    %243 = vrot.lane.b32.xlu0 %v169, 30
    %v244 = vpop.permute.xlu0 %243
    %245 = vrot.lane.b32.xlu0 %v170, 30
    %v246 = vpop.permute.xlu0 %245
    %247 = vrot.lane.b32.xlu0 %v171, 30
    %v248 = vpop.permute.xlu0 %247
    %249 = vrot.lane.b32.xlu0 %v172, 30
    %v250 = vpop.permute.xlu0 %249
    %251 = vrot.lane.b32.xlu0 %v173, 30
    %v252 = vpop.permute.xlu0 %251
    %253 = vrot.lane.b32.xlu0 %v174, 30
    %v254 = vpop.permute.xlu0 %253
    %v263 = vsel %vm101, %v216, %v240
    %v264 = vsel %vm101, %v218, %v242
    %v265 = vsel %vm101, %v220, %v244
    %v266 = vsel %vm101, %v222, %v246
    %v267 = vsel %vm101, %v224, %v248
    %v268 = vsel %vm101, %v226, %v250
    %v269 = vsel %vm101, %v228, %v252
    %v270 = vsel %vm101, %v230, %v254
    %s271 = scalar_lea.vmem [#allocation7], 64
    %v272 = vld [vmem:[%s271] sm:$0xff]
    %v273 = vld [vmem:[%s271 + $0x8] sm:$0xff]
    %v274 = vld [vmem:[%s271 + $0x10] sm:$0xff]
    %v275 = vld [vmem:[%s271 + $0x18] sm:$0xff]
    %v276 = vld [vmem:[%s271 + $0x80] sm:$0xff]
    %v277 = vld [vmem:[%s271 + $0x88] sm:$0xff]
    %v278 = vld [vmem:[%s271 + $0x90] sm:$0xff]
    %v279 = vld [vmem:[%s271 + $0x98] sm:$0xff]
    %288 = vrot.lane.b32.xlu0 %v272, 31
    %v289 = vpop.permute.xlu0 %288
    %290 = vrot.lane.b32.xlu0 %v273, 31
    %v291 = vpop.permute.xlu0 %290
    %292 = vrot.lane.b32.xlu0 %v274, 31
    %v293 = vpop.permute.xlu0 %292
    %294 = vrot.lane.b32.xlu0 %v275, 31
    %v295 = vpop.permute.xlu0 %294
    %296 = vrot.lane.b32.xlu0 %v276, 31
    %v297 = vpop.permute.xlu0 %296
    %298 = vrot.lane.b32.xlu0 %v277, 31
    %v299 = vpop.permute.xlu0 %298
    %300 = vrot.lane.b32.xlu0 %v278, 31
    %v301 = vpop.permute.xlu0 %300
    %302 = vrot.lane.b32.xlu0 %v279, 31
    %v303 = vpop.permute.xlu0 %302
    %v312 = vsel %vm101, %v272, %v289
    %v313 = vsel %vm101, %v273, %v291
    %v314 = vsel %vm101, %v274, %v293
    %v315 = vsel %vm101, %v275, %v295
    %v316 = vsel %vm101, %v276, %v297
    %v317 = vsel %vm101, %v277, %v299
    %v318 = vsel %vm101, %v278, %v301
    %v319 = vsel %vm101, %v279, %v303
    %320 = vrot.lane.b32.xlu0 %v272, 127
    %v321 = vpop.permute.xlu0 %320
    %322 = vrot.lane.b32.xlu0 %v273, 127
    %v323 = vpop.permute.xlu0 %322
    %324 = vrot.lane.b32.xlu0 %v274, 127
    %v325 = vpop.permute.xlu0 %324
    %326 = vrot.lane.b32.xlu0 %v275, 127
    %v327 = vpop.permute.xlu0 %326
    %328 = vrot.lane.b32.xlu0 %v276, 127
    %v329 = vpop.permute.xlu0 %328
    %330 = vrot.lane.b32.xlu0 %v277, 127
    %v331 = vpop.permute.xlu0 %330
    %332 = vrot.lane.b32.xlu0 %v278, 127
    %v333 = vpop.permute.xlu0 %332
    %334 = vrot.lane.b32.xlu0 %v279, 127
    %v335 = vpop.permute.xlu0 %334
    %344 = vrot.lane.b32.xlu0 %v272, 30
    %v345 = vpop.permute.xlu0 %344
    %346 = vrot.lane.b32.xlu0 %v273, 30
    %v347 = vpop.permute.xlu0 %346
    %348 = vrot.lane.b32.xlu0 %v274, 30
    %v349 = vpop.permute.xlu0 %348
    %350 = vrot.lane.b32.xlu0 %v275, 30
    %v351 = vpop.permute.xlu0 %350
    %352 = vrot.lane.b32.xlu0 %v276, 30
    %v353 = vpop.permute.xlu0 %352
    %354 = vrot.lane.b32.xlu0 %v277, 30
    %v355 = vpop.permute.xlu0 %354
    %356 = vrot.lane.b32.xlu0 %v278, 30
    %v357 = vpop.permute.xlu0 %356
    %358 = vrot.lane.b32.xlu0 %v279, 30
    %v359 = vpop.permute.xlu0 %358
    %v368 = vsel %vm101, %v321, %v345
    %v369 = vsel %vm101, %v323, %v347
    %v370 = vsel %vm101, %v325, %v349
    %v371 = vsel %vm101, %v327, %v351
    %v372 = vsel %vm101, %v329, %v353
    %v373 = vsel %vm101, %v331, %v355
    %v374 = vsel %vm101, %v333, %v357
    %v375 = vsel %vm101, %v335, %v359
    %s376 = scalar_lea.vmem [#allocation7], 96
    %v377 = vld [vmem:[%s376] sm:$0xff]
    %v378 = vld [vmem:[%s376 + $0x8] sm:$0xff]
    %v379 = vld [vmem:[%s376 + $0x10] sm:$0xff]
    %v380 = vld [vmem:[%s376 + $0x18] sm:$0xff]
    %v381 = vld [vmem:[%s376 + $0x80] sm:$0xff]
    %v382 = vld [vmem:[%s376 + $0x88] sm:$0xff]
    %v383 = vld [vmem:[%s376 + $0x90] sm:$0xff]
    %v384 = vld [vmem:[%s376 + $0x98] sm:$0xff]
    %393 = vrot.lane.b32.xlu0 %v377, 31
    %v394 = vpop.permute.xlu0 %393
    %395 = vrot.lane.b32.xlu0 %v378, 31
    %v396 = vpop.permute.xlu0 %395
    %397 = vrot.lane.b32.xlu0 %v379, 31
    %v398 = vpop.permute.xlu0 %397
    %399 = vrot.lane.b32.xlu0 %v380, 31
    %v400 = vpop.permute.xlu0 %399
    %401 = vrot.lane.b32.xlu0 %v381, 31
    %v402 = vpop.permute.xlu0 %401
    %403 = vrot.lane.b32.xlu0 %v382, 31
    %v404 = vpop.permute.xlu0 %403
    %405 = vrot.lane.b32.xlu0 %v383, 31
    %v406 = vpop.permute.xlu0 %405
    %407 = vrot.lane.b32.xlu0 %v384, 31
    %v408 = vpop.permute.xlu0 %407
    %v417 = vsel %vm101, %v377, %v394
    %v418 = vsel %vm101, %v378, %v396
    %v419 = vsel %vm101, %v379, %v398
    %v420 = vsel %vm101, %v380, %v400
    %v421 = vsel %vm101, %v381, %v402
    %v422 = vsel %vm101, %v382, %v404
    %v423 = vsel %vm101, %v383, %v406
    %v424 = vsel %vm101, %v384, %v408
    %425 = vrot.lane.b32.xlu0 %v377, 127
    %v426 = vpop.permute.xlu0 %425
    %427 = vrot.lane.b32.xlu0 %v378, 127
    %v428 = vpop.permute.xlu0 %427
    %429 = vrot.lane.b32.xlu0 %v379, 127
    %v430 = vpop.permute.xlu0 %429
    %431 = vrot.lane.b32.xlu0 %v380, 127
    %v432 = vpop.permute.xlu0 %431
    %433 = vrot.lane.b32.xlu0 %v381, 127
    %v434 = vpop.permute.xlu0 %433
    %435 = vrot.lane.b32.xlu0 %v382, 127
    %v436 = vpop.permute.xlu0 %435
    %437 = vrot.lane.b32.xlu0 %v383, 127
    %v438 = vpop.permute.xlu0 %437
    %439 = vrot.lane.b32.xlu0 %v384, 127
    %v440 = vpop.permute.xlu0 %439
    %449 = vrot.lane.b32.xlu0 %v377, 30
    %v450 = vpop.permute.xlu0 %449
    %451 = vrot.lane.b32.xlu0 %v378, 30
    %v452 = vpop.permute.xlu0 %451
    %453 = vrot.lane.b32.xlu0 %v379, 30
    %v454 = vpop.permute.xlu0 %453
    %455 = vrot.lane.b32.xlu0 %v380, 30
    %v456 = vpop.permute.xlu0 %455
    %457 = vrot.lane.b32.xlu0 %v381, 30
    %v458 = vpop.permute.xlu0 %457
    %459 = vrot.lane.b32.xlu0 %v382, 30
    %v460 = vpop.permute.xlu0 %459
    %461 = vrot.lane.b32.xlu0 %v383, 30
    %v462 = vpop.permute.xlu0 %461
    %463 = vrot.lane.b32.xlu0 %v384, 30
    %v464 = vpop.permute.xlu0 %463
    %v473 = vsel %vm101, %v426, %v450
    %v474 = vsel %vm101, %v428, %v452
    %v475 = vsel %vm101, %v430, %v454
    %v476 = vsel %vm101, %v432, %v456
    %v477 = vsel %vm101, %v434, %v458
    %v478 = vsel %vm101, %v436, %v460
    %v479 = vsel %vm101, %v438, %v462
    %v480 = vsel %vm101, %v440, %v464
    %v481 = vlaneseq
    %v482 = vshrl.u32 %v481, 7
    %v483 = vsub.s32 0, %v482
    %v484 = vrot.slane %v59, %v483
    %v485 = vmul.f32 %v484, %v102
    %v486 = vmul.f32 %v484, %v103
    %v487 = vmul.f32 %v484, %v104
    %v488 = vmul.f32 %v484, %v105
    %v489 = vmul.f32 %v484, %v106
    %v490 = vmul.f32 %v484, %v107
    %v491 = vmul.f32 %v484, %v108
    %v492 = vmul.f32 %v484, %v109
    %v493 = vlaneseq
    %v494 = vshrl.u32 %v493, 7
    %v495 = vsub.s32 1, %v494
    %v496 = vrot.slane %v59, %v495
    %v497 = vmul.f32 %v496, %v207
    %v498 = vmul.f32 %v496, %v208
    %v499 = vmul.f32 %v496, %v209
    %v500 = vmul.f32 %v496, %v210
    %v501 = vmul.f32 %v496, %v211
    %v502 = vmul.f32 %v496, %v212
    %v503 = vmul.f32 %v496, %v213
    %v504 = vmul.f32 %v496, %v214
    %v505 = vadd.f32 %v485, %v497
    %v506 = vadd.f32 %v486, %v498
    %v507 = vadd.f32 %v487, %v499
    %v508 = vadd.f32 %v488, %v500
    %v509 = vadd.f32 %v489, %v501
    %v510 = vadd.f32 %v490, %v502
    %v511 = vadd.f32 %v491, %v503
    %v512 = vadd.f32 %v492, %v504
    %v513 = vlaneseq
    %v514 = vshrl.u32 %v513, 7
    %v515 = vsub.s32 2, %v514
    %v516 = vrot.slane %v59, %v515
    %v517 = vmul.f32 %v516, %v158
    %v518 = vmul.f32 %v516, %v159
    %v519 = vmul.f32 %v516, %v160
    %v520 = vmul.f32 %v516, %v161
    %v521 = vmul.f32 %v516, %v162
    %v522 = vmul.f32 %v516, %v163
    %v523 = vmul.f32 %v516, %v164
    %v524 = vmul.f32 %v516, %v165
    %v525 = vadd.f32 %v505, %v517
    %v526 = vadd.f32 %v506, %v518
    %v527 = vadd.f32 %v507, %v519
    %v528 = vadd.f32 %v508, %v520
    %v529 = vadd.f32 %v509, %v521
    %v530 = vadd.f32 %v510, %v522
    %v531 = vadd.f32 %v511, %v523
    %v532 = vadd.f32 %v512, %v524
    %v533 = vlaneseq
    %v534 = vshrl.u32 %v533, 7
    %v535 = vsub.s32 3, %v534
    %v536 = vrot.slane %v59, %v535
    %v537 = vmul.f32 %v536, %v312
    %v538 = vmul.f32 %v536, %v313
    %v539 = vmul.f32 %v536, %v314
    %v540 = vmul.f32 %v536, %v315
    %v541 = vmul.f32 %v536, %v316
    %v542 = vmul.f32 %v536, %v317
    %v543 = vmul.f32 %v536, %v318
    %v544 = vmul.f32 %v536, %v319
    %v545 = vadd.f32 %v525, %v537
    %v546 = vadd.f32 %v526, %v538
    %v547 = vadd.f32 %v527, %v539
    %v548 = vadd.f32 %v528, %v540
    %v549 = vadd.f32 %v529, %v541
    %v550 = vadd.f32 %v530, %v542
    %v551 = vadd.f32 %v531, %v543
    %v552 = vadd.f32 %v532, %v544
    %v553 = vlaneseq
    %v554 = vshrl.u32 %v553, 7
    %v555 = vsub.s32 4, %v554
    %v556 = vrot.slane %v59, %v555
    %v557 = vmul.f32 %v556, %v417
    %v558 = vmul.f32 %v556, %v418
    %v559 = vmul.f32 %v556, %v419
    %v560 = vmul.f32 %v556, %v420
    %v561 = vmul.f32 %v556, %v421
    %v562 = vmul.f32 %v556, %v422
    %v563 = vmul.f32 %v556, %v423
    %v564 = vmul.f32 %v556, %v424
    %v565 = vadd.f32 %v545, %v557
    %v566 = vadd.f32 %v546, %v558
    %v567 = vadd.f32 %v547, %v559
    %v568 = vadd.f32 %v548, %v560
    %v569 = vadd.f32 %v549, %v561
    %v570 = vadd.f32 %v550, %v562
    %v571 = vadd.f32 %v551, %v563
    %v572 = vadd.f32 %v552, %v564
    %v573 = vlaneseq
    %v574 = vshrl.u32 %v573, 7
    %v575 = vsub.s32 5, %v574
    %v576 = vrot.slane %v59, %v575
    %v577 = vmul.f32 %v576, %v368
    %v578 = vmul.f32 %v576, %v369
    %v579 = vmul.f32 %v576, %v370
    %v580 = vmul.f32 %v576, %v371
    %v581 = vmul.f32 %v576, %v372
    %v582 = vmul.f32 %v576, %v373
    %v583 = vmul.f32 %v576, %v374
    %v584 = vmul.f32 %v576, %v375
    %v585 = vadd.f32 %v565, %v577
    %v586 = vadd.f32 %v566, %v578
    %v587 = vadd.f32 %v567, %v579
    %v588 = vadd.f32 %v568, %v580
    %v589 = vadd.f32 %v569, %v581
    %v590 = vadd.f32 %v570, %v582
    %v591 = vadd.f32 %v571, %v583
    %v592 = vadd.f32 %v572, %v584
    %v593 = vlaneseq
    %v594 = vshrl.u32 %v593, 7
    %v595 = vsub.s32 6, %v594
    %v596 = vrot.slane %v59, %v595
    %v597 = vmul.f32 %v596, %v102
    %v598 = vmul.f32 %v596, %v103
    %v599 = vmul.f32 %v596, %v104
    %v600 = vmul.f32 %v596, %v105
    %v601 = vmul.f32 %v596, %v106
    %v602 = vmul.f32 %v596, %v107
    %v603 = vmul.f32 %v596, %v108
    %v604 = vmul.f32 %v596, %v109
    %vm613 = vcmask 1046528
    %v614 = vrot.slane %v597, 1
    %v615 = vrot.slane %v598, 1
    %v616 = vsel %vm613, %v614, %v615
    %v617 = vrot.slane %v599, 1
    %v618 = vsel %vm613, %v615, %v617
    %v619 = vrot.slane %v600, 1
    %v620 = vsel %vm613, %v617, %v619
    %v621 = vrot.slane %v601, 1
    %v622 = vrot.slane %v602, 1
    %v623 = vsel %vm613, %v621, %v622
    %v624 = vrot.slane %v603, 1
    %v625 = vsel %vm613, %v622, %v624
    %v626 = vrot.slane %v604, 1
    %v627 = vsel %vm613, %v624, %v626
    %v636 = vadd.f32 %v585, %v616
    %v637 = vadd.f32 %v586, %v618
    %v638 = vadd.f32 %v587, %v620
    %v639 = vadd.f32 %v588, %v619
    %v640 = vadd.f32 %v589, %v623
    %v641 = vadd.f32 %v590, %v625
    %v642 = vadd.f32 %v591, %v627
    %v643 = vadd.f32 %v592, %v626
    %v644 = vlaneseq
    %v645 = vshrl.u32 %v644, 7
    %v646 = vsub.s32 7, %v645
    %v647 = vrot.slane %v59, %v646
    %v648 = vmul.f32 %v647, %v207
    %v649 = vmul.f32 %v647, %v208
    %v650 = vmul.f32 %v647, %v209
    %v651 = vmul.f32 %v647, %v210
    %v652 = vmul.f32 %v647, %v211
    %v653 = vmul.f32 %v647, %v212
    %v654 = vmul.f32 %v647, %v213
    %v655 = vmul.f32 %v647, %v214
    %v664 = vrot.slane %v648, 1
    %v665 = vrot.slane %v649, 1
    %v666 = vsel %vm613, %v664, %v665
    %v667 = vrot.slane %v650, 1
    %v668 = vsel %vm613, %v665, %v667
    %v669 = vrot.slane %v651, 1
    %v670 = vsel %vm613, %v667, %v669
    %v671 = vrot.slane %v652, 1
    %v672 = vrot.slane %v653, 1
    %v673 = vsel %vm613, %v671, %v672
    %v674 = vrot.slane %v654, 1
    %v675 = vsel %vm613, %v672, %v674
    %v676 = vrot.slane %v655, 1
    %v677 = vsel %vm613, %v674, %v676
    %v686 = vadd.f32 %v636, %v666
    %v687 = vadd.f32 %v637, %v668
    %v688 = vadd.f32 %v638, %v670
    %v689 = vadd.f32 %v639, %v669
    %v690 = vadd.f32 %v640, %v673
    %v691 = vadd.f32 %v641, %v675
    %v692 = vadd.f32 %v642, %v677
    %v693 = vadd.f32 %v643, %v676
    %v694 = vlaneseq
    %v695 = vshrl.u32 %v694, 7
    %v696 = vsub.s32 0, %v695
    %v697 = vrot.slane %v60, %v696
    %v698 = vmul.f32 %v697, %v158
    %v699 = vmul.f32 %v697, %v159
    %v700 = vmul.f32 %v697, %v160
    %v701 = vmul.f32 %v697, %v161
    %v702 = vmul.f32 %v697, %v162
    %v703 = vmul.f32 %v697, %v163
    %v704 = vmul.f32 %v697, %v164
    %v705 = vmul.f32 %v697, %v165
    %v714 = vrot.slane %v698, 1
    %v715 = vrot.slane %v699, 1
    %v716 = vsel %vm613, %v714, %v715
    %v717 = vrot.slane %v700, 1
    %v718 = vsel %vm613, %v715, %v717
    %v719 = vrot.slane %v701, 1
    %v720 = vsel %vm613, %v717, %v719
    %v721 = vrot.slane %v702, 1
    %v722 = vrot.slane %v703, 1
    %v723 = vsel %vm613, %v721, %v722
    %v724 = vrot.slane %v704, 1
    %v725 = vsel %vm613, %v722, %v724
    %v726 = vrot.slane %v705, 1
    %v727 = vsel %vm613, %v724, %v726
    %v736 = vadd.f32 %v686, %v716
    %v737 = vadd.f32 %v687, %v718
    %v738 = vadd.f32 %v688, %v720
    %v739 = vadd.f32 %v689, %v719
    %v740 = vadd.f32 %v690, %v723
    %v741 = vadd.f32 %v691, %v725
    %v742 = vadd.f32 %v692, %v727
    %v743 = vadd.f32 %v693, %v726
    %v744 = vmul.f32 %v484, %v207
    %v745 = vmul.f32 %v484, %v208
    %v746 = vmul.f32 %v484, %v209
    %v747 = vmul.f32 %v484, %v210
    %v748 = vmul.f32 %v484, %v211
    %v749 = vmul.f32 %v484, %v212
    %v750 = vmul.f32 %v484, %v213
    %v751 = vmul.f32 %v484, %v214
    %v752 = vmul.f32 %v496, %v158
    %v753 = vmul.f32 %v496, %v159
    %v754 = vmul.f32 %v496, %v160
    %v755 = vmul.f32 %v496, %v161
    %v756 = vmul.f32 %v496, %v162
    %v757 = vmul.f32 %v496, %v163
    %v758 = vmul.f32 %v496, %v164
    %v759 = vmul.f32 %v496, %v165
    %v760 = vadd.f32 %v744, %v752
    %v761 = vadd.f32 %v745, %v753
    %v762 = vadd.f32 %v746, %v754
    %v763 = vadd.f32 %v747, %v755
    %v764 = vadd.f32 %v748, %v756
    %v765 = vadd.f32 %v749, %v757
    %v766 = vadd.f32 %v750, %v758
    %v767 = vadd.f32 %v751, %v759
    %v768 = vmul.f32 %v516, %v263
    %v769 = vmul.f32 %v516, %v264
    %v770 = vmul.f32 %v516, %v265
    %v771 = vmul.f32 %v516, %v266
    %v772 = vmul.f32 %v516, %v267
    %v773 = vmul.f32 %v516, %v268
    %v774 = vmul.f32 %v516, %v269
    %v775 = vmul.f32 %v516, %v270
    %v776 = vadd.f32 %v760, %v768
    %v777 = vadd.f32 %v761, %v769
    %v778 = vadd.f32 %v762, %v770
    %v779 = vadd.f32 %v763, %v771
    %v780 = vadd.f32 %v764, %v772
    %v781 = vadd.f32 %v765, %v773
    %v782 = vadd.f32 %v766, %v774
    %v783 = vadd.f32 %v767, %v775
    %v784 = vmul.f32 %v536, %v417
    %v785 = vmul.f32 %v536, %v418
    %v786 = vmul.f32 %v536, %v419
    %v787 = vmul.f32 %v536, %v420
    %v788 = vmul.f32 %v536, %v421
    %v789 = vmul.f32 %v536, %v422
    %v790 = vmul.f32 %v536, %v423
    %v791 = vmul.f32 %v536, %v424
    %v792 = vadd.f32 %v776, %v784
    %v793 = vadd.f32 %v777, %v785
    %v794 = vadd.f32 %v778, %v786
    %v795 = vadd.f32 %v779, %v787
    %v796 = vadd.f32 %v780, %v788
    %v797 = vadd.f32 %v781, %v789
    %v798 = vadd.f32 %v782, %v790
    %v799 = vadd.f32 %v783, %v791
    %v800 = vmul.f32 %v556, %v368
    %v801 = vmul.f32 %v556, %v369
    %v802 = vmul.f32 %v556, %v370
    %v803 = vmul.f32 %v556, %v371
    %v804 = vmul.f32 %v556, %v372
    %v805 = vmul.f32 %v556, %v373
    %v806 = vmul.f32 %v556, %v374
    %v807 = vmul.f32 %v556, %v375
    %v808 = vadd.f32 %v792, %v800
    %v809 = vadd.f32 %v793, %v801
    %v810 = vadd.f32 %v794, %v802
    %v811 = vadd.f32 %v795, %v803
    %v812 = vadd.f32 %v796, %v804
    %v813 = vadd.f32 %v797, %v805
    %v814 = vadd.f32 %v798, %v806
    %v815 = vadd.f32 %v799, %v807
    %v816 = vmul.f32 %v576, %v473
    %v817 = vmul.f32 %v576, %v474
    %v818 = vmul.f32 %v576, %v475
    %v819 = vmul.f32 %v576, %v476
    %v820 = vmul.f32 %v576, %v477
    %v821 = vmul.f32 %v576, %v478
    %v822 = vmul.f32 %v576, %v479
    %v823 = vmul.f32 %v576, %v480
    %v824 = vadd.f32 %v808, %v816
    %v825 = vadd.f32 %v809, %v817
    %v826 = vadd.f32 %v810, %v818
    %v827 = vadd.f32 %v811, %v819
    %v828 = vadd.f32 %v812, %v820
    %v829 = vadd.f32 %v813, %v821
    %v830 = vadd.f32 %v814, %v822
    %v831 = vadd.f32 %v815, %v823
    %v832 = vmul.f32 %v596, %v207
    %v833 = vmul.f32 %v596, %v208
    %v834 = vmul.f32 %v596, %v209
    %v835 = vmul.f32 %v596, %v210
    %v836 = vmul.f32 %v596, %v211
    %v837 = vmul.f32 %v596, %v212
    %v838 = vmul.f32 %v596, %v213
    %v839 = vmul.f32 %v596, %v214
    %v848 = vrot.slane %v832, 1
    %v849 = vrot.slane %v833, 1
    %v850 = vsel %vm613, %v848, %v849
    %v851 = vrot.slane %v834, 1
    %v852 = vsel %vm613, %v849, %v851
    %v853 = vrot.slane %v835, 1
    %v854 = vsel %vm613, %v851, %v853
    %v855 = vrot.slane %v836, 1
    %v856 = vrot.slane %v837, 1
    %v857 = vsel %vm613, %v855, %v856
    %v858 = vrot.slane %v838, 1
    %v859 = vsel %vm613, %v856, %v858
    %v860 = vrot.slane %v839, 1
    %v861 = vsel %vm613, %v858, %v860
    %v870 = vadd.f32 %v824, %v850
    %v871 = vadd.f32 %v825, %v852
    %v872 = vadd.f32 %v826, %v854
    %v873 = vadd.f32 %v827, %v853
    %v874 = vadd.f32 %v828, %v857
    %v875 = vadd.f32 %v829, %v859
    %v876 = vadd.f32 %v830, %v861
    %v877 = vadd.f32 %v831, %v860
    %v878 = vmul.f32 %v647, %v158
    %v879 = vmul.f32 %v647, %v159
    %v880 = vmul.f32 %v647, %v160
    %v881 = vmul.f32 %v647, %v161
    %v882 = vmul.f32 %v647, %v162
    %v883 = vmul.f32 %v647, %v163
    %v884 = vmul.f32 %v647, %v164
    %v885 = vmul.f32 %v647, %v165
    %v894 = vrot.slane %v878, 1
    %v895 = vrot.slane %v879, 1
    %v896 = vsel %vm613, %v894, %v895
    %v897 = vrot.slane %v880, 1
    %v898 = vsel %vm613, %v895, %v897
    %v899 = vrot.slane %v881, 1
    %v900 = vsel %vm613, %v897, %v899
    %v901 = vrot.slane %v882, 1
    %v902 = vrot.slane %v883, 1
    %v903 = vsel %vm613, %v901, %v902
    %v904 = vrot.slane %v884, 1
    %v905 = vsel %vm613, %v902, %v904
    %v906 = vrot.slane %v885, 1
    %v907 = vsel %vm613, %v904, %v906
    %v916 = vadd.f32 %v870, %v896
    %v917 = vadd.f32 %v871, %v898
    %v918 = vadd.f32 %v872, %v900
    %v919 = vadd.f32 %v873, %v899
    %v920 = vadd.f32 %v874, %v903
    %v921 = vadd.f32 %v875, %v905
    %v922 = vadd.f32 %v876, %v907
    %v923 = vadd.f32 %v877, %v906
    %v924 = vmul.f32 %v697, %v263
    %v925 = vmul.f32 %v697, %v264
    %v926 = vmul.f32 %v697, %v265
    %v927 = vmul.f32 %v697, %v266
    %v928 = vmul.f32 %v697, %v267
    %v929 = vmul.f32 %v697, %v268
    %v930 = vmul.f32 %v697, %v269
    %v931 = vmul.f32 %v697, %v270
    %v940 = vrot.slane %v924, 1
    %v941 = vrot.slane %v925, 1
    %v942 = vsel %vm613, %v940, %v941
    %v943 = vrot.slane %v926, 1
    %v944 = vsel %vm613, %v941, %v943
    %v945 = vrot.slane %v927, 1
    %v946 = vsel %vm613, %v943, %v945
    %v947 = vrot.slane %v928, 1
    %v948 = vrot.slane %v929, 1
    %v949 = vsel %vm613, %v947, %v948
    %v950 = vrot.slane %v930, 1
    %v951 = vsel %vm613, %v948, %v950
    %v952 = vrot.slane %v931, 1
    %v953 = vsel %vm613, %v950, %v952
    %v962 = vadd.f32 %v916, %v942
    %v963 = vadd.f32 %v917, %v944
    %v964 = vadd.f32 %v918, %v946
    %v965 = vadd.f32 %v919, %v945
    %v966 = vadd.f32 %v920, %v949
    %v967 = vadd.f32 %v921, %v951
    %v968 = vadd.f32 %v922, %v953
    %v969 = vadd.f32 %v923, %v952
    %v970 = vmax.f32 %v736, %v962
    %v971 = vmax.f32 %v737, %v963
    %v972 = vmax.f32 %v738, %v964
    %v973 = vmax.f32 %v739, %v965
    %v974 = vmax.f32 %v740, %v966
    %v975 = vmax.f32 %v741, %v967
    %v976 = vmax.f32 %v742, %v968
    %v977 = vmax.f32 %v743, %v969
    %v978 = vmul.f32 %v484, %v312
    %v979 = vmul.f32 %v484, %v313
    %v980 = vmul.f32 %v484, %v314
    %v981 = vmul.f32 %v484, %v315
    %v982 = vmul.f32 %v484, %v316
    %v983 = vmul.f32 %v484, %v317
    %v984 = vmul.f32 %v484, %v318
    %v985 = vmul.f32 %v484, %v319
    %v986 = vmul.f32 %v496, %v417
    %v987 = vmul.f32 %v496, %v418
    %v988 = vmul.f32 %v496, %v419
    %v989 = vmul.f32 %v496, %v420
    %v990 = vmul.f32 %v496, %v421
    %v991 = vmul.f32 %v496, %v422
    %v992 = vmul.f32 %v496, %v423
    %v993 = vmul.f32 %v496, %v424
    %v994 = vadd.f32 %v978, %v986
    %v995 = vadd.f32 %v979, %v987
    %v996 = vadd.f32 %v980, %v988
    %v997 = vadd.f32 %v981, %v989
    %v998 = vadd.f32 %v982, %v990
    %v999 = vadd.f32 %v983, %v991
    %v1000 = vadd.f32 %v984, %v992
    %v1001 = vadd.f32 %v985, %v993
    %v1002 = vmul.f32 %v516, %v368
    %v1003 = vmul.f32 %v516, %v369
    %v1004 = vmul.f32 %v516, %v370
    %v1005 = vmul.f32 %v516, %v371
    %v1006 = vmul.f32 %v516, %v372
    %v1007 = vmul.f32 %v516, %v373
    %v1008 = vmul.f32 %v516, %v374
    %v1009 = vmul.f32 %v516, %v375
    %v1010 = vadd.f32 %v994, %v1002
    %v1011 = vadd.f32 %v995, %v1003
    %v1012 = vadd.f32 %v996, %v1004
    %v1013 = vadd.f32 %v997, %v1005
    %v1014 = vadd.f32 %v998, %v1006
    %v1015 = vadd.f32 %v999, %v1007
    %v1016 = vadd.f32 %v1000, %v1008
    %v1017 = vadd.f32 %v1001, %v1009
    %v1018 = vmul.f32 %v536, %v102
    %v1019 = vmul.f32 %v536, %v103
    %v1020 = vmul.f32 %v536, %v104
    %v1021 = vmul.f32 %v536, %v105
    %v1022 = vmul.f32 %v536, %v106
    %v1023 = vmul.f32 %v536, %v107
    %v1024 = vmul.f32 %v536, %v108
    %v1025 = vmul.f32 %v536, %v109
    %v1034 = vrot.slane %v1018, 1
    %v1035 = vrot.slane %v1019, 1
    %v1036 = vsel %vm613, %v1034, %v1035
    %v1037 = vrot.slane %v1020, 1
    %v1038 = vsel %vm613, %v1035, %v1037
    %v1039 = vrot.slane %v1021, 1
    %v1040 = vsel %vm613, %v1037, %v1039
    %v1041 = vrot.slane %v1022, 1
    %v1042 = vrot.slane %v1023, 1
    %v1043 = vsel %vm613, %v1041, %v1042
    %v1044 = vrot.slane %v1024, 1
    %v1045 = vsel %vm613, %v1042, %v1044
    %v1046 = vrot.slane %v1025, 1
    %v1047 = vsel %vm613, %v1044, %v1046
    %v1056 = vadd.f32 %v1010, %v1036
    %v1057 = vadd.f32 %v1011, %v1038
    %v1058 = vadd.f32 %v1012, %v1040
    %v1059 = vadd.f32 %v1013, %v1039
    %v1060 = vadd.f32 %v1014, %v1043
    %v1061 = vadd.f32 %v1015, %v1045
    %v1062 = vadd.f32 %v1016, %v1047
    %v1063 = vadd.f32 %v1017, %v1046
    %v1064 = vmul.f32 %v556, %v207
    %v1065 = vmul.f32 %v556, %v208
    %v1066 = vmul.f32 %v556, %v209
    %v1067 = vmul.f32 %v556, %v210
    %v1068 = vmul.f32 %v556, %v211
    %v1069 = vmul.f32 %v556, %v212
    %v1070 = vmul.f32 %v556, %v213
    %v1071 = vmul.f32 %v556, %v214
    %v1080 = vrot.slane %v1064, 1
    %v1081 = vrot.slane %v1065, 1
    %v1082 = vsel %vm613, %v1080, %v1081
    %v1083 = vrot.slane %v1066, 1
    %v1084 = vsel %vm613, %v1081, %v1083
    %v1085 = vrot.slane %v1067, 1
    %v1086 = vsel %vm613, %v1083, %v1085
    %v1087 = vrot.slane %v1068, 1
    %v1088 = vrot.slane %v1069, 1
    %v1089 = vsel %vm613, %v1087, %v1088
    %v1090 = vrot.slane %v1070, 1
    %v1091 = vsel %vm613, %v1088, %v1090
    %v1092 = vrot.slane %v1071, 1
    %v1093 = vsel %vm613, %v1090, %v1092
    %v1102 = vadd.f32 %v1056, %v1082
    %v1103 = vadd.f32 %v1057, %v1084
    %v1104 = vadd.f32 %v1058, %v1086
    %v1105 = vadd.f32 %v1059, %v1085
    %v1106 = vadd.f32 %v1060, %v1089
    %v1107 = vadd.f32 %v1061, %v1091
    %v1108 = vadd.f32 %v1062, %v1093
    %v1109 = vadd.f32 %v1063, %v1092
    %v1110 = vmul.f32 %v576, %v158
    %v1111 = vmul.f32 %v576, %v159
    %v1112 = vmul.f32 %v576, %v160
    %v1113 = vmul.f32 %v576, %v161
    %v1114 = vmul.f32 %v576, %v162
    %v1115 = vmul.f32 %v576, %v163
    %v1116 = vmul.f32 %v576, %v164
    %v1117 = vmul.f32 %v576, %v165
    %v1126 = vrot.slane %v1110, 1
    %v1127 = vrot.slane %v1111, 1
    %v1128 = vsel %vm613, %v1126, %v1127
    %v1129 = vrot.slane %v1112, 1
    %v1130 = vsel %vm613, %v1127, %v1129
    %v1131 = vrot.slane %v1113, 1
    %v1132 = vsel %vm613, %v1129, %v1131
    %v1133 = vrot.slane %v1114, 1
    %v1134 = vrot.slane %v1115, 1
    %v1135 = vsel %vm613, %v1133, %v1134
    %v1136 = vrot.slane %v1116, 1
    %v1137 = vsel %vm613, %v1134, %v1136
    %v1138 = vrot.slane %v1117, 1
    %v1139 = vsel %vm613, %v1136, %v1138
    %v1148 = vadd.f32 %v1102, %v1128
    %v1149 = vadd.f32 %v1103, %v1130
    %v1150 = vadd.f32 %v1104, %v1132
    %v1151 = vadd.f32 %v1105, %v1131
    %v1152 = vadd.f32 %v1106, %v1135
    %v1153 = vadd.f32 %v1107, %v1137
    %v1154 = vadd.f32 %v1108, %v1139
    %v1155 = vadd.f32 %v1109, %v1138
    %v1156 = vmul.f32 %v596, %v312
    %v1157 = vmul.f32 %v596, %v313
    %v1158 = vmul.f32 %v596, %v314
    %v1159 = vmul.f32 %v596, %v315
    %v1160 = vmul.f32 %v596, %v316
    %v1161 = vmul.f32 %v596, %v317
    %v1162 = vmul.f32 %v596, %v318
    %v1163 = vmul.f32 %v596, %v319
    %v1172 = vrot.slane %v1156, 1
    %v1173 = vrot.slane %v1157, 1
    %v1174 = vsel %vm613, %v1172, %v1173
    %v1175 = vrot.slane %v1158, 1
    %v1176 = vsel %vm613, %v1173, %v1175
    %v1177 = vrot.slane %v1159, 1
    %v1178 = vsel %vm613, %v1175, %v1177
    %v1179 = vrot.slane %v1160, 1
    %v1180 = vrot.slane %v1161, 1
    %v1181 = vsel %vm613, %v1179, %v1180
    %v1182 = vrot.slane %v1162, 1
    %v1183 = vsel %vm613, %v1180, %v1182
    %v1184 = vrot.slane %v1163, 1
    %v1185 = vsel %vm613, %v1182, %v1184
    %v1194 = vadd.f32 %v1148, %v1174
    %v1195 = vadd.f32 %v1149, %v1176
    %v1196 = vadd.f32 %v1150, %v1178
    %v1197 = vadd.f32 %v1151, %v1177
    %v1198 = vadd.f32 %v1152, %v1181
    %v1199 = vadd.f32 %v1153, %v1183
    %v1200 = vadd.f32 %v1154, %v1185
    %v1201 = vadd.f32 %v1155, %v1184
    %v1202 = vmul.f32 %v647, %v417
    %v1203 = vmul.f32 %v647, %v418
    %v1204 = vmul.f32 %v647, %v419
    %v1205 = vmul.f32 %v647, %v420
    %v1206 = vmul.f32 %v647, %v421
    %v1207 = vmul.f32 %v647, %v422
    %v1208 = vmul.f32 %v647, %v423
    %v1209 = vmul.f32 %v647, %v424
    %v1218 = vrot.slane %v1202, 1
    %v1219 = vrot.slane %v1203, 1
    %v1220 = vsel %vm613, %v1218, %v1219
    %v1221 = vrot.slane %v1204, 1
    %v1222 = vsel %vm613, %v1219, %v1221
    %v1223 = vrot.slane %v1205, 1
    %v1224 = vsel %vm613, %v1221, %v1223
    %v1225 = vrot.slane %v1206, 1
    %v1226 = vrot.slane %v1207, 1
    %v1227 = vsel %vm613, %v1225, %v1226
    %v1228 = vrot.slane %v1208, 1
    %v1229 = vsel %vm613, %v1226, %v1228
    %v1230 = vrot.slane %v1209, 1
    %v1231 = vsel %vm613, %v1228, %v1230
    %v1240 = vadd.f32 %v1194, %v1220
    %v1241 = vadd.f32 %v1195, %v1222
    %v1242 = vadd.f32 %v1196, %v1224
    %v1243 = vadd.f32 %v1197, %v1223
    %v1244 = vadd.f32 %v1198, %v1227
    %v1245 = vadd.f32 %v1199, %v1229
    %v1246 = vadd.f32 %v1200, %v1231
    %v1247 = vadd.f32 %v1201, %v1230
    %v1248 = vmul.f32 %v697, %v368
    %v1249 = vmul.f32 %v697, %v369
    %v1250 = vmul.f32 %v697, %v370
    %v1251 = vmul.f32 %v697, %v371
    %v1252 = vmul.f32 %v697, %v372
    %v1253 = vmul.f32 %v697, %v373
    %v1254 = vmul.f32 %v697, %v374
    %v1255 = vmul.f32 %v697, %v375
    %v1264 = vrot.slane %v1248, 1
    %v1265 = vrot.slane %v1249, 1
    %v1266 = vsel %vm613, %v1264, %v1265
    %v1267 = vrot.slane %v1250, 1
    %v1268 = vsel %vm613, %v1265, %v1267
    %v1269 = vrot.slane %v1251, 1
    %v1270 = vsel %vm613, %v1267, %v1269
    %v1271 = vrot.slane %v1252, 1
    %v1272 = vrot.slane %v1253, 1
    %v1273 = vsel %vm613, %v1271, %v1272
    %v1274 = vrot.slane %v1254, 1
    %v1275 = vsel %vm613, %v1272, %v1274
    %v1276 = vrot.slane %v1255, 1
    %v1277 = vsel %vm613, %v1274, %v1276
    %v1286 = vadd.f32 %v1240, %v1266
    %v1287 = vadd.f32 %v1241, %v1268
    %v1288 = vadd.f32 %v1242, %v1270
    %v1289 = vadd.f32 %v1243, %v1269
    %v1290 = vadd.f32 %v1244, %v1273
    %v1291 = vadd.f32 %v1245, %v1275
    %v1292 = vadd.f32 %v1246, %v1277
    %v1293 = vadd.f32 %v1247, %v1276
    %v1294 = vmax.f32 %v970, %v1286
    %v1295 = vmax.f32 %v971, %v1287
    %v1296 = vmax.f32 %v972, %v1288
    %v1297 = vmax.f32 %v973, %v1289
    %v1298 = vmax.f32 %v974, %v1290
    %v1299 = vmax.f32 %v975, %v1291
    %v1300 = vmax.f32 %v976, %v1292
    %v1301 = vmax.f32 %v977, %v1293
    %v1302 = vmul.f32 %v484, %v417
    %v1303 = vmul.f32 %v484, %v418
    %v1304 = vmul.f32 %v484, %v419
    %v1305 = vmul.f32 %v484, %v420
    %v1306 = vmul.f32 %v484, %v421
    %v1307 = vmul.f32 %v484, %v422
    %v1308 = vmul.f32 %v484, %v423
    %v1309 = vmul.f32 %v484, %v424
    %v1310 = vmul.f32 %v496, %v368
    %v1311 = vmul.f32 %v496, %v369
    %v1312 = vmul.f32 %v496, %v370
    %v1313 = vmul.f32 %v496, %v371
    %v1314 = vmul.f32 %v496, %v372
    %v1315 = vmul.f32 %v496, %v373
    %v1316 = vmul.f32 %v496, %v374
    %v1317 = vmul.f32 %v496, %v375
    %v1318 = vadd.f32 %v1302, %v1310
    %v1319 = vadd.f32 %v1303, %v1311
    %v1320 = vadd.f32 %v1304, %v1312
    %v1321 = vadd.f32 %v1305, %v1313
    %v1322 = vadd.f32 %v1306, %v1314
    %v1323 = vadd.f32 %v1307, %v1315
    %v1324 = vadd.f32 %v1308, %v1316
    %v1325 = vadd.f32 %v1309, %v1317
    %v1326 = vmul.f32 %v516, %v473
    %v1327 = vmul.f32 %v516, %v474
    %v1328 = vmul.f32 %v516, %v475
    %v1329 = vmul.f32 %v516, %v476
    %v1330 = vmul.f32 %v516, %v477
    %v1331 = vmul.f32 %v516, %v478
    %v1332 = vmul.f32 %v516, %v479
    %v1333 = vmul.f32 %v516, %v480
    %v1334 = vadd.f32 %v1318, %v1326
    %v1335 = vadd.f32 %v1319, %v1327
    %v1336 = vadd.f32 %v1320, %v1328
    %v1337 = vadd.f32 %v1321, %v1329
    %v1338 = vadd.f32 %v1322, %v1330
    %v1339 = vadd.f32 %v1323, %v1331
    %v1340 = vadd.f32 %v1324, %v1332
    %v1341 = vadd.f32 %v1325, %v1333
    %v1342 = vmul.f32 %v536, %v207
    %v1343 = vmul.f32 %v536, %v208
    %v1344 = vmul.f32 %v536, %v209
    %v1345 = vmul.f32 %v536, %v210
    %v1346 = vmul.f32 %v536, %v211
    %v1347 = vmul.f32 %v536, %v212
    %v1348 = vmul.f32 %v536, %v213
    %v1349 = vmul.f32 %v536, %v214
    %v1358 = vrot.slane %v1342, 1
    %v1359 = vrot.slane %v1343, 1
    %v1360 = vsel %vm613, %v1358, %v1359
    %v1361 = vrot.slane %v1344, 1
    %v1362 = vsel %vm613, %v1359, %v1361
    %v1363 = vrot.slane %v1345, 1
    %v1364 = vsel %vm613, %v1361, %v1363
    %v1365 = vrot.slane %v1346, 1
    %v1366 = vrot.slane %v1347, 1
    %v1367 = vsel %vm613, %v1365, %v1366
    %v1368 = vrot.slane %v1348, 1
    %v1369 = vsel %vm613, %v1366, %v1368
    %v1370 = vrot.slane %v1349, 1
    %v1371 = vsel %vm613, %v1368, %v1370
    %v1380 = vadd.f32 %v1334, %v1360
    %v1381 = vadd.f32 %v1335, %v1362
    %v1382 = vadd.f32 %v1336, %v1364
    %v1383 = vadd.f32 %v1337, %v1363
    %v1384 = vadd.f32 %v1338, %v1367
    %v1385 = vadd.f32 %v1339, %v1369
    %v1386 = vadd.f32 %v1340, %v1371
    %v1387 = vadd.f32 %v1341, %v1370
    %v1388 = vmul.f32 %v556, %v158
    %v1389 = vmul.f32 %v556, %v159
    %v1390 = vmul.f32 %v556, %v160
    %v1391 = vmul.f32 %v556, %v161
    %v1392 = vmul.f32 %v556, %v162
    %v1393 = vmul.f32 %v556, %v163
    %v1394 = vmul.f32 %v556, %v164
    %v1395 = vmul.f32 %v556, %v165
    %v1404 = vrot.slane %v1388, 1
    %v1405 = vrot.slane %v1389, 1
    %v1406 = vsel %vm613, %v1404, %v1405
    %v1407 = vrot.slane %v1390, 1
    %v1408 = vsel %vm613, %v1405, %v1407
    %v1409 = vrot.slane %v1391, 1
    %v1410 = vsel %vm613, %v1407, %v1409
    %v1411 = vrot.slane %v1392, 1
    %v1412 = vrot.slane %v1393, 1
    %v1413 = vsel %vm613, %v1411, %v1412
    %v1414 = vrot.slane %v1394, 1
    %v1415 = vsel %vm613, %v1412, %v1414
    %v1416 = vrot.slane %v1395, 1
    %v1417 = vsel %vm613, %v1414, %v1416
    %v1426 = vadd.f32 %v1380, %v1406
    %v1427 = vadd.f32 %v1381, %v1408
    %v1428 = vadd.f32 %v1382, %v1410
    %v1429 = vadd.f32 %v1383, %v1409
    %v1430 = vadd.f32 %v1384, %v1413
    %v1431 = vadd.f32 %v1385, %v1415
    %v1432 = vadd.f32 %v1386, %v1417
    %v1433 = vadd.f32 %v1387, %v1416
    %v1434 = vmul.f32 %v576, %v263
    %v1435 = vmul.f32 %v576, %v264
    %v1436 = vmul.f32 %v576, %v265
    %v1437 = vmul.f32 %v576, %v266
    %v1438 = vmul.f32 %v576, %v267
    %v1439 = vmul.f32 %v576, %v268
    %v1440 = vmul.f32 %v576, %v269
    %v1441 = vmul.f32 %v576, %v270
    %v1450 = vrot.slane %v1434, 1
    %v1451 = vrot.slane %v1435, 1
    %v1452 = vsel %vm613, %v1450, %v1451
    %v1453 = vrot.slane %v1436, 1
    %v1454 = vsel %vm613, %v1451, %v1453
    %v1455 = vrot.slane %v1437, 1
    %v1456 = vsel %vm613, %v1453, %v1455
    %v1457 = vrot.slane %v1438, 1
    %v1458 = vrot.slane %v1439, 1
    %v1459 = vsel %vm613, %v1457, %v1458
    %v1460 = vrot.slane %v1440, 1
    %v1461 = vsel %vm613, %v1458, %v1460
    %v1462 = vrot.slane %v1441, 1
    %v1463 = vsel %vm613, %v1460, %v1462
    %v1472 = vadd.f32 %v1426, %v1452
    %v1473 = vadd.f32 %v1427, %v1454
    %v1474 = vadd.f32 %v1428, %v1456
    %v1475 = vadd.f32 %v1429, %v1455
    %v1476 = vadd.f32 %v1430, %v1459
    %v1477 = vadd.f32 %v1431, %v1461
    %v1478 = vadd.f32 %v1432, %v1463
    %v1479 = vadd.f32 %v1433, %v1462
    %v1480 = vmul.f32 %v596, %v417
    %v1481 = vmul.f32 %v596, %v418
    %v1482 = vmul.f32 %v596, %v419
    %v1483 = vmul.f32 %v596, %v420
    %v1484 = vmul.f32 %v596, %v421
    %v1485 = vmul.f32 %v596, %v422
    %v1486 = vmul.f32 %v596, %v423
    %v1487 = vmul.f32 %v596, %v424
    %v1496 = vrot.slane %v1480, 1
    %v1497 = vrot.slane %v1481, 1
    %v1498 = vsel %vm613, %v1496, %v1497
    %v1499 = vrot.slane %v1482, 1
    %v1500 = vsel %vm613, %v1497, %v1499
    %v1501 = vrot.slane %v1483, 1
    %v1502 = vsel %vm613, %v1499, %v1501
    %v1503 = vrot.slane %v1484, 1
    %v1504 = vrot.slane %v1485, 1
    %v1505 = vsel %vm613, %v1503, %v1504
    %v1506 = vrot.slane %v1486, 1
    %v1507 = vsel %vm613, %v1504, %v1506
    %v1508 = vrot.slane %v1487, 1
    %v1509 = vsel %vm613, %v1506, %v1508
    %v1518 = vadd.f32 %v1472, %v1498
    %v1519 = vadd.f32 %v1473, %v1500
    %v1520 = vadd.f32 %v1474, %v1502
    %v1521 = vadd.f32 %v1475, %v1501
    %v1522 = vadd.f32 %v1476, %v1505
    %v1523 = vadd.f32 %v1477, %v1507
    %v1524 = vadd.f32 %v1478, %v1509
    %v1525 = vadd.f32 %v1479, %v1508
    %v1526 = vmul.f32 %v647, %v368
    %v1527 = vmul.f32 %v647, %v369
    %v1528 = vmul.f32 %v647, %v370
    %v1529 = vmul.f32 %v647, %v371
    %v1530 = vmul.f32 %v647, %v372
    %v1531 = vmul.f32 %v647, %v373
    %v1532 = vmul.f32 %v647, %v374
    %v1533 = vmul.f32 %v647, %v375
    %v1542 = vrot.slane %v1526, 1
    %v1543 = vrot.slane %v1527, 1
    %v1544 = vsel %vm613, %v1542, %v1543
    %v1545 = vrot.slane %v1528, 1
    %v1546 = vsel %vm613, %v1543, %v1545
    %v1547 = vrot.slane %v1529, 1
    %v1548 = vsel %vm613, %v1545, %v1547
    %v1549 = vrot.slane %v1530, 1
    %v1550 = vrot.slane %v1531, 1
    %v1551 = vsel %vm613, %v1549, %v1550
    %v1552 = vrot.slane %v1532, 1
    %v1553 = vsel %vm613, %v1550, %v1552
    %v1554 = vrot.slane %v1533, 1
    %v1555 = vsel %vm613, %v1552, %v1554
    %v1564 = vadd.f32 %v1518, %v1544
    %v1565 = vadd.f32 %v1519, %v1546
    %v1566 = vadd.f32 %v1520, %v1548
    %v1567 = vadd.f32 %v1521, %v1547
    %v1568 = vadd.f32 %v1522, %v1551
    %v1569 = vadd.f32 %v1523, %v1553
    %v1570 = vadd.f32 %v1524, %v1555
    %v1571 = vadd.f32 %v1525, %v1554
    %v1572 = vmul.f32 %v697, %v473
    %v1573 = vmul.f32 %v697, %v474
    %v1574 = vmul.f32 %v697, %v475
    %v1575 = vmul.f32 %v697, %v476
    %v1576 = vmul.f32 %v697, %v477
    %v1577 = vmul.f32 %v697, %v478
    %v1578 = vmul.f32 %v697, %v479
    %v1579 = vmul.f32 %v697, %v480
    %v1588 = vrot.slane %v1572, 1
    %v1589 = vrot.slane %v1573, 1
    %v1590 = vsel %vm613, %v1588, %v1589
    %v1591 = vrot.slane %v1574, 1
    %v1592 = vsel %vm613, %v1589, %v1591
    %v1593 = vrot.slane %v1575, 1
    %v1594 = vsel %vm613, %v1591, %v1593
    %v1595 = vrot.slane %v1576, 1
    %v1596 = vrot.slane %v1577, 1
    %v1597 = vsel %vm613, %v1595, %v1596
    %v1598 = vrot.slane %v1578, 1
    %v1599 = vsel %vm613, %v1596, %v1598
    %v1600 = vrot.slane %v1579, 1
    %v1601 = vsel %vm613, %v1598, %v1600
    %v1610 = vadd.f32 %v1564, %v1590
    %v1611 = vadd.f32 %v1565, %v1592
    %v1612 = vadd.f32 %v1566, %v1594
    %v1613 = vadd.f32 %v1567, %v1593
    %v1614 = vadd.f32 %v1568, %v1597
    %v1615 = vadd.f32 %v1569, %v1599
    %v1616 = vadd.f32 %v1570, %v1601
    %v1617 = vadd.f32 %v1571, %v1600
    %v1618 = vmax.f32 %v1294, %v1610
    %v1619 = vmax.f32 %v1295, %v1611
    %v1620 = vmax.f32 %v1296, %v1612
    %v1621 = vmax.f32 %v1297, %v1613
    %v1622 = vmax.f32 %v1298, %v1614
    %v1623 = vmax.f32 %v1299, %v1615
    %v1624 = vmax.f32 %v1300, %v1616
    %v1625 = vmax.f32 %v1301, %v1617
    %v1626 = vlaneseq
    %v1627 = vshrl.u32 %v1626, 7
    %v1628 = vsub.s32 1, %v1627
    %v1629 = vrot.slane %v60, %v1628
    %v1630 = vadd.f32 %v1618, %v1629
    %v1631 = vadd.f32 %v1619, %v1629
    %v1632 = vadd.f32 %v1620, %v1629
    %v1633 = vadd.f32 %v1621, %v1629
    %v1634 = vadd.f32 %v1622, %v1629
    %v1635 = vadd.f32 %v1623, %v1629
    %v1636 = vadd.f32 %v1624, %v1629
    %v1637 = vadd.f32 %v1625, %v1629
    %v1638 = vmax.f32 %v1630, 0.0
    %v1639 = vmax.f32 %v1631, 0.0
    %v1640 = vmax.f32 %v1632, 0.0
    %v1641 = vmax.f32 %v1633, 0.0
    %v1642 = vmax.f32 %v1634, 0.0
    %v1643 = vmax.f32 %v1635, 0.0
    %v1644 = vmax.f32 %v1636, 0.0
    %v1645 = vmax.f32 %v1637, 0.0
    %v1646 = vld [vmem:[#allocation5] sm:$0xff]
    %v1647 = vld [vmem:[#allocation5 + $0x8] sm:$0xff]
    %v1648 = vld [vmem:[#allocation5 + $0x10] sm:$0xff]
    %v1649 = vld [vmem:[#allocation5 + $0x18] sm:$0x7f]
    %v1650 = vld [vmem:[#allocation5 + $0x20] sm:$0xff]
    %v1651 = vld [vmem:[#allocation5 + $0x28] sm:$0xff]
    %v1652 = vld [vmem:[#allocation5 + $0x30] sm:$0xff]
    %v1653 = vld [vmem:[#allocation5 + $0x38] sm:$0x7f]
    %v1654 = vld [vmem:[#allocation5 + $0x40] sm:$0xff]
    %v1655 = vld [vmem:[#allocation5 + $0x48] sm:$0xff]
    %v1656 = vld [vmem:[#allocation5 + $0x50] sm:$0xff]
    %v1657 = vld [vmem:[#allocation5 + $0x58] sm:$0x7f]
    %v1658 = vld [vmem:[#allocation5 + $0x60] sm:$0xff]
    %v1659 = vld [vmem:[#allocation5 + $0x68] sm:$0xff]
    %v1660 = vld [vmem:[#allocation5 + $0x70] sm:$0xff]
    %v1661 = vld [vmem:[#allocation5 + $0x78] sm:$0x7f]
    %v1662 = vld [vmem:[#allocation5 + $0x80] sm:$0xff]
    %v1663 = vld [vmem:[#allocation5 + $0x88] sm:$0xff]
    %v1664 = vld [vmem:[#allocation5 + $0x90] sm:$0xff]
    %v1665 = vld [vmem:[#allocation5 + $0x98] sm:$0x7f]
    %v1666 = vld [vmem:[#allocation5 + $0xa0] sm:$0xff]
    %v1667 = vld [vmem:[#allocation5 + $0xa8] sm:$0xff]
    %v1668 = vld [vmem:[#allocation5 + $0xb0] sm:$0xff]
    %v1669 = vld [vmem:[#allocation5 + $0xb8] sm:$0x7f]
    %v1670 = vld [vmem:[#allocation5 + $0xc0] sm:$0xff]
    %v1671 = vld [vmem:[#allocation5 + $0xc8] sm:$0xff]
    %v1672 = vld [vmem:[#allocation5 + $0xd0] sm:$0xff]
    %v1673 = vld [vmem:[#allocation5 + $0xd8] sm:$0x7f]
    %v1674 = vmul.f32 %v1638, %v1646
    %v1675 = vmul.f32 %v1639, %v1647
    %v1676 = vmul.f32 %v1640, %v1648
    %v1677 = vmul.f32 %v1641, %v1649
    %v1678 = vmul.f32 %v1642, %v1646
    %v1679 = vmul.f32 %v1643, %v1647
    %v1680 = vmul.f32 %v1644, %v1648
    %v1681 = vmul.f32 %v1645, %v1649
    %vm1682 = vcmask 506880
    %v1683 = vsel %vm1682, %v1674, 0.0
    %1684 = vadd.xlane.f32.xlu0 %v1683
    %v1685 = vpop.xlane.xlu0 %1684
    %v1686 = vsel %vm1682, %v1675, 0.0
    %1687 = vadd.xlane.f32.xlu0 %v1686
    %v1688 = vpop.xlane.xlu0 %1687
    %v1689 = vsel %vm1682, %v1676, 0.0
    %1690 = vadd.xlane.f32.xlu0 %v1689
    %v1691 = vpop.xlane.xlu0 %1690
    %vm1692 = vcmask 505856
    %v1693 = vsel %vm1692, %v1677, 0.0
    %1694 = vadd.xlane.f32.xlu0 %v1693
    %v1695 = vpop.xlane.xlu0 %1694
    %v1696 = vsel %vm1682, %v1678, 0.0
    %1697 = vadd.xlane.f32.xlu0 %v1696
    %v1698 = vpop.xlane.xlu0 %1697
    %v1699 = vsel %vm1682, %v1679, 0.0
    %1700 = vadd.xlane.f32.xlu0 %v1699
    %v1701 = vpop.xlane.xlu0 %1700
    %v1702 = vsel %vm1682, %v1680, 0.0
    %1703 = vadd.xlane.f32.xlu0 %v1702
    %v1704 = vpop.xlane.xlu0 %1703
    %v1705 = vsel %vm1692, %v1681, 0.0
    %1706 = vadd.xlane.f32.xlu0 %v1705
    %v1707 = vpop.xlane.xlu0 %1706
    %v1716 = vlaneseq
    %v1717 = vand.u32 %v1716, 127
    %v1718 = vlaneseq
    %v1719 = vshrl.u32 %v1718, 7
    %v1720 = vsub.s32 %v1717, %v1719
    %v1721 = vrot.slane %v1685, %v1720
    %v1722 = vadd.s32 %v1717, 4294967288
    %v1723 = vlaneseq
    %v1724 = vshrl.u32 %v1723, 7
    %v1725 = vsub.s32 %v1722, %v1724
    %v1726 = vrot.slane %v1688, %v1725
    %vm1727 = vcmask 130112
    %v1728 = vsel %vm1727, %v1726, %v1721
    %v1729 = vadd.s32 %v1717, 4294967280
    %v1730 = vlaneseq
    %v1731 = vshrl.u32 %v1730, 7
    %v1732 = vsub.s32 %v1729, %v1731
    %v1733 = vrot.slane %v1691, %v1732
    %vm1734 = vcmask 195712
    %v1735 = vsel %vm1734, %v1733, %v1728
    %v1736 = vadd.s32 %v1717, 4294967272
    %v1737 = vlaneseq
    %v1738 = vshrl.u32 %v1737, 7
    %v1739 = vsub.s32 %v1736, %v1738
    %v1740 = vrot.slane %v1695, %v1739
    %vm1741 = vcmask 261312
    %v1742 = vsel %vm1741, %v1740, %v1735
    %v1743 = vlaneseq
    %v1744 = vshrl.u32 %v1743, 7
    %v1745 = vsub.s32 %v1717, %v1744
    %v1746 = vrot.slane %v1698, %v1745
    %v1747 = vlaneseq
    %v1748 = vshrl.u32 %v1747, 7
    %v1749 = vsub.s32 %v1722, %v1748
    %v1750 = vrot.slane %v1701, %v1749
    %v1751 = vsel %vm1727, %v1750, %v1746
    %v1752 = vlaneseq
    %v1753 = vshrl.u32 %v1752, 7
    %v1754 = vsub.s32 %v1729, %v1753
    %v1755 = vrot.slane %v1704, %v1754
    %v1756 = vsel %vm1734, %v1755, %v1751
    %v1757 = vlaneseq
    %v1758 = vshrl.u32 %v1757, 7
    %v1759 = vsub.s32 %v1736, %v1758
    %v1760 = vrot.slane %v1707, %v1759
    %v1761 = vsel %vm1741, %v1760, %v1756
    %vm1762 = vcmask 1041409
    %v1763 = vsel %vm1762, %v1761, %v1742
    %vm1765 = vcmask 246784
    %v1766 = vsel %vm1765, %v1763, 0.0
    %1767 = vadd.xlane.f32.xlu0 %v1766
    %v1768 = vpop.xlane.xlu0 %1767
    %v1769 = vmul.f32 %v1638, %v1650
    %v1770 = vmul.f32 %v1639, %v1651
    %v1771 = vmul.f32 %v1640, %v1652
    %v1772 = vmul.f32 %v1641, %v1653
    %v1773 = vmul.f32 %v1642, %v1650
    %v1774 = vmul.f32 %v1643, %v1651
    %v1775 = vmul.f32 %v1644, %v1652
    %v1776 = vmul.f32 %v1645, %v1653
    %v1777 = vsel %vm1682, %v1769, 0.0
    %1778 = vadd.xlane.f32.xlu0 %v1777
    %v1779 = vpop.xlane.xlu0 %1778
    %v1780 = vsel %vm1682, %v1770, 0.0
    %1781 = vadd.xlane.f32.xlu0 %v1780
    %v1782 = vpop.xlane.xlu0 %1781
    %v1783 = vsel %vm1682, %v1771, 0.0
    %1784 = vadd.xlane.f32.xlu0 %v1783
    %v1785 = vpop.xlane.xlu0 %1784
    %v1786 = vsel %vm1692, %v1772, 0.0
    %1787 = vadd.xlane.f32.xlu0 %v1786
    %v1788 = vpop.xlane.xlu0 %1787
    %v1789 = vsel %vm1682, %v1773, 0.0
    %1790 = vadd.xlane.f32.xlu0 %v1789
    %v1791 = vpop.xlane.xlu0 %1790
    %v1792 = vsel %vm1682, %v1774, 0.0
    %1793 = vadd.xlane.f32.xlu0 %v1792
    %v1794 = vpop.xlane.xlu0 %1793
    %v1795 = vsel %vm1682, %v1775, 0.0
    %1796 = vadd.xlane.f32.xlu0 %v1795
    %v1797 = vpop.xlane.xlu0 %1796
    %v1798 = vsel %vm1692, %v1776, 0.0
    %1799 = vadd.xlane.f32.xlu0 %v1798
    %v1800 = vpop.xlane.xlu0 %1799
    %v1809 = vlaneseq
    %v1810 = vshrl.u32 %v1809, 7
    %v1811 = vsub.s32 %v1717, %v1810
    %v1812 = vrot.slane %v1779, %v1811
    %v1813 = vlaneseq
    %v1814 = vshrl.u32 %v1813, 7
    %v1815 = vsub.s32 %v1722, %v1814
    %v1816 = vrot.slane %v1782, %v1815
    %v1817 = vsel %vm1727, %v1816, %v1812
    %v1818 = vlaneseq
    %v1819 = vshrl.u32 %v1818, 7
    %v1820 = vsub.s32 %v1729, %v1819
    %v1821 = vrot.slane %v1785, %v1820
    %v1822 = vsel %vm1734, %v1821, %v1817
    %v1823 = vlaneseq
    %v1824 = vshrl.u32 %v1823, 7
    %v1825 = vsub.s32 %v1736, %v1824
    %v1826 = vrot.slane %v1788, %v1825
    %v1827 = vsel %vm1741, %v1826, %v1822
    %v1828 = vlaneseq
    %v1829 = vshrl.u32 %v1828, 7
    %v1830 = vsub.s32 %v1717, %v1829
    %v1831 = vrot.slane %v1791, %v1830
    %v1832 = vlaneseq
    %v1833 = vshrl.u32 %v1832, 7
    %v1834 = vsub.s32 %v1722, %v1833
    %v1835 = vrot.slane %v1794, %v1834
    %v1836 = vsel %vm1727, %v1835, %v1831
    %v1837 = vlaneseq
    %v1838 = vshrl.u32 %v1837, 7
    %v1839 = vsub.s32 %v1729, %v1838
    %v1840 = vrot.slane %v1797, %v1839
    %v1841 = vsel %vm1734, %v1840, %v1836
    %v1842 = vlaneseq
    %v1843 = vshrl.u32 %v1842, 7
    %v1844 = vsub.s32 %v1736, %v1843
    %v1845 = vrot.slane %v1800, %v1844
    %v1846 = vsel %vm1741, %v1845, %v1841
    %v1847 = vsel %vm1762, %v1846, %v1827
    %v1849 = vsel %vm1765, %v1847, 0.0
    %1850 = vadd.xlane.f32.xlu0 %v1849
    %v1851 = vpop.xlane.xlu0 %1850
    %v1852 = vmul.f32 %v1638, %v1654
    %v1853 = vmul.f32 %v1639, %v1655
    %v1854 = vmul.f32 %v1640, %v1656
    %v1855 = vmul.f32 %v1641, %v1657
    %v1856 = vmul.f32 %v1642, %v1654
    %v1857 = vmul.f32 %v1643, %v1655
    %v1858 = vmul.f32 %v1644, %v1656
    %v1859 = vmul.f32 %v1645, %v1657
    %v1860 = vsel %vm1682, %v1852, 0.0
    %1861 = vadd.xlane.f32.xlu0 %v1860
    %v1862 = vpop.xlane.xlu0 %1861
    %v1863 = vsel %vm1682, %v1853, 0.0
    %1864 = vadd.xlane.f32.xlu0 %v1863
    %v1865 = vpop.xlane.xlu0 %1864
    %v1866 = vsel %vm1682, %v1854, 0.0
    %1867 = vadd.xlane.f32.xlu0 %v1866
    %v1868 = vpop.xlane.xlu0 %1867
    %v1869 = vsel %vm1692, %v1855, 0.0
    %1870 = vadd.xlane.f32.xlu0 %v1869
    %v1871 = vpop.xlane.xlu0 %1870
    %v1872 = vsel %vm1682, %v1856, 0.0
    %1873 = vadd.xlane.f32.xlu0 %v1872
    %v1874 = vpop.xlane.xlu0 %1873
    %v1875 = vsel %vm1682, %v1857, 0.0
    %1876 = vadd.xlane.f32.xlu0 %v1875
    %v1877 = vpop.xlane.xlu0 %1876
    %v1878 = vsel %vm1682, %v1858, 0.0
    %1879 = vadd.xlane.f32.xlu0 %v1878
    %v1880 = vpop.xlane.xlu0 %1879
    %v1881 = vsel %vm1692, %v1859, 0.0
    %1882 = vadd.xlane.f32.xlu0 %v1881
    %v1883 = vpop.xlane.xlu0 %1882
    %v1892 = vlaneseq
    %v1893 = vshrl.u32 %v1892, 7
    %v1894 = vsub.s32 %v1717, %v1893
    %v1895 = vrot.slane %v1862, %v1894
    %v1896 = vlaneseq
    %v1897 = vshrl.u32 %v1896, 7
    %v1898 = vsub.s32 %v1722, %v1897
    %v1899 = vrot.slane %v1865, %v1898
    %v1900 = vsel %vm1727, %v1899, %v1895
    %v1901 = vlaneseq
    %v1902 = vshrl.u32 %v1901, 7
    %v1903 = vsub.s32 %v1729, %v1902
    %v1904 = vrot.slane %v1868, %v1903
    %v1905 = vsel %vm1734, %v1904, %v1900
    %v1906 = vlaneseq
    %v1907 = vshrl.u32 %v1906, 7
    %v1908 = vsub.s32 %v1736, %v1907
    %v1909 = vrot.slane %v1871, %v1908
    %v1910 = vsel %vm1741, %v1909, %v1905
    %v1911 = vlaneseq
    %v1912 = vshrl.u32 %v1911, 7
    %v1913 = vsub.s32 %v1717, %v1912
    %v1914 = vrot.slane %v1874, %v1913
    %v1915 = vlaneseq
    %v1916 = vshrl.u32 %v1915, 7
    %v1917 = vsub.s32 %v1722, %v1916
    %v1918 = vrot.slane %v1877, %v1917
    %v1919 = vsel %vm1727, %v1918, %v1914
    %v1920 = vlaneseq
    %v1921 = vshrl.u32 %v1920, 7
    %v1922 = vsub.s32 %v1729, %v1921
    %v1923 = vrot.slane %v1880, %v1922
    %v1924 = vsel %vm1734, %v1923, %v1919
    %v1925 = vlaneseq
    %v1926 = vshrl.u32 %v1925, 7
    %v1927 = vsub.s32 %v1736, %v1926
    %v1928 = vrot.slane %v1883, %v1927
    %v1929 = vsel %vm1741, %v1928, %v1924
    %v1930 = vsel %vm1762, %v1929, %v1910
    %v1932 = vsel %vm1765, %v1930, 0.0
    %1933 = vadd.xlane.f32.xlu0 %v1932
    %v1934 = vpop.xlane.xlu0 %1933
    %v1935 = vmul.f32 %v1638, %v1658
    %v1936 = vmul.f32 %v1639, %v1659
    %v1937 = vmul.f32 %v1640, %v1660
    %v1938 = vmul.f32 %v1641, %v1661
    %v1939 = vmul.f32 %v1642, %v1658
    %v1940 = vmul.f32 %v1643, %v1659
    %v1941 = vmul.f32 %v1644, %v1660
    %v1942 = vmul.f32 %v1645, %v1661
    %v1943 = vsel %vm1682, %v1935, 0.0
    %1944 = vadd.xlane.f32.xlu0 %v1943
    %v1945 = vpop.xlane.xlu0 %1944
    %v1946 = vsel %vm1682, %v1936, 0.0
    %1947 = vadd.xlane.f32.xlu0 %v1946
    %v1948 = vpop.xlane.xlu0 %1947
    %v1949 = vsel %vm1682, %v1937, 0.0
    %1950 = vadd.xlane.f32.xlu0 %v1949
    %v1951 = vpop.xlane.xlu0 %1950
    %v1952 = vsel %vm1692, %v1938, 0.0
    %1953 = vadd.xlane.f32.xlu0 %v1952
    %v1954 = vpop.xlane.xlu0 %1953
    %v1955 = vsel %vm1682, %v1939, 0.0
    %1956 = vadd.xlane.f32.xlu0 %v1955
    %v1957 = vpop.xlane.xlu0 %1956
    %v1958 = vsel %vm1682, %v1940, 0.0
    %1959 = vadd.xlane.f32.xlu0 %v1958
    %v1960 = vpop.xlane.xlu0 %1959
    %v1961 = vsel %vm1682, %v1941, 0.0
    %1962 = vadd.xlane.f32.xlu0 %v1961
    %v1963 = vpop.xlane.xlu0 %1962
    %v1964 = vsel %vm1692, %v1942, 0.0
    %1965 = vadd.xlane.f32.xlu0 %v1964
    %v1966 = vpop.xlane.xlu0 %1965
    %v1975 = vlaneseq
    %v1976 = vshrl.u32 %v1975, 7
    %v1977 = vsub.s32 %v1717, %v1976
    %v1978 = vrot.slane %v1945, %v1977
    %v1979 = vlaneseq
    %v1980 = vshrl.u32 %v1979, 7
    %v1981 = vsub.s32 %v1722, %v1980
    %v1982 = vrot.slane %v1948, %v1981
    %v1983 = vsel %vm1727, %v1982, %v1978
    %v1984 = vlaneseq
    %v1985 = vshrl.u32 %v1984, 7
    %v1986 = vsub.s32 %v1729, %v1985
    %v1987 = vrot.slane %v1951, %v1986
    %v1988 = vsel %vm1734, %v1987, %v1983
    %v1989 = vlaneseq
    %v1990 = vshrl.u32 %v1989, 7
    %v1991 = vsub.s32 %v1736, %v1990
    %v1992 = vrot.slane %v1954, %v1991
    %v1993 = vsel %vm1741, %v1992, %v1988
    %v1994 = vlaneseq
    %v1995 = vshrl.u32 %v1994, 7
    %v1996 = vsub.s32 %v1717, %v1995
    %v1997 = vrot.slane %v1957, %v1996
    %v1998 = vlaneseq
    %v1999 = vshrl.u32 %v1998, 7
    %v2000 = vsub.s32 %v1722, %v1999
    %v2001 = vrot.slane %v1960, %v2000
    %v2002 = vsel %vm1727, %v2001, %v1997
    %v2003 = vlaneseq
    %v2004 = vshrl.u32 %v2003, 7
    %v2005 = vsub.s32 %v1729, %v2004
    %v2006 = vrot.slane %v1963, %v2005
    %v2007 = vsel %vm1734, %v2006, %v2002
    %v2008 = vlaneseq
    %v2009 = vshrl.u32 %v2008, 7
    %v2010 = vsub.s32 %v1736, %v2009
    %v2011 = vrot.slane %v1966, %v2010
    %v2012 = vsel %vm1741, %v2011, %v2007
    %v2013 = vsel %vm1762, %v2012, %v1993
    %v2015 = vsel %vm1765, %v2013, 0.0
    %2016 = vadd.xlane.f32.xlu0 %v2015
    %v2017 = vpop.xlane.xlu0 %2016
    %v2018 = vmul.f32 %v1638, %v1662
    %v2019 = vmul.f32 %v1639, %v1663
    %v2020 = vmul.f32 %v1640, %v1664
    %v2021 = vmul.f32 %v1641, %v1665
    %v2022 = vmul.f32 %v1642, %v1662
    %v2023 = vmul.f32 %v1643, %v1663
    %v2024 = vmul.f32 %v1644, %v1664
    %v2025 = vmul.f32 %v1645, %v1665
    %v2026 = vsel %vm1682, %v2018, 0.0
    %2027 = vadd.xlane.f32.xlu0 %v2026
    %v2028 = vpop.xlane.xlu0 %2027
    %v2029 = vsel %vm1682, %v2019, 0.0
    %2030 = vadd.xlane.f32.xlu0 %v2029
    %v2031 = vpop.xlane.xlu0 %2030
    %v2032 = vsel %vm1682, %v2020, 0.0
    %2033 = vadd.xlane.f32.xlu0 %v2032
    %v2034 = vpop.xlane.xlu0 %2033
    %v2035 = vsel %vm1692, %v2021, 0.0
    %2036 = vadd.xlane.f32.xlu0 %v2035
    %v2037 = vpop.xlane.xlu0 %2036
    %v2038 = vsel %vm1682, %v2022, 0.0
    %2039 = vadd.xlane.f32.xlu0 %v2038
    %v2040 = vpop.xlane.xlu0 %2039
    %v2041 = vsel %vm1682, %v2023, 0.0
    %2042 = vadd.xlane.f32.xlu0 %v2041
    %v2043 = vpop.xlane.xlu0 %2042
    %v2044 = vsel %vm1682, %v2024, 0.0
    %2045 = vadd.xlane.f32.xlu0 %v2044
    %v2046 = vpop.xlane.xlu0 %2045
    %v2047 = vsel %vm1692, %v2025, 0.0
    %2048 = vadd.xlane.f32.xlu0 %v2047
    %v2049 = vpop.xlane.xlu0 %2048
    %v2058 = vlaneseq
    %v2059 = vshrl.u32 %v2058, 7
    %v2060 = vsub.s32 %v1717, %v2059
    %v2061 = vrot.slane %v2028, %v2060
    %v2062 = vlaneseq
    %v2063 = vshrl.u32 %v2062, 7
    %v2064 = vsub.s32 %v1722, %v2063
    %v2065 = vrot.slane %v2031, %v2064
    %v2066 = vsel %vm1727, %v2065, %v2061
    %v2067 = vlaneseq
    %v2068 = vshrl.u32 %v2067, 7
    %v2069 = vsub.s32 %v1729, %v2068
    %v2070 = vrot.slane %v2034, %v2069
    %v2071 = vsel %vm1734, %v2070, %v2066
    %v2072 = vlaneseq
    %v2073 = vshrl.u32 %v2072, 7
    %v2074 = vsub.s32 %v1736, %v2073
    %v2075 = vrot.slane %v2037, %v2074
    %v2076 = vsel %vm1741, %v2075, %v2071
    %v2077 = vlaneseq
    %v2078 = vshrl.u32 %v2077, 7
    %v2079 = vsub.s32 %v1717, %v2078
    %v2080 = vrot.slane %v2040, %v2079
    %v2081 = vlaneseq
    %v2082 = vshrl.u32 %v2081, 7
    %v2083 = vsub.s32 %v1722, %v2082
    %v2084 = vrot.slane %v2043, %v2083
    %v2085 = vsel %vm1727, %v2084, %v2080
    %v2086 = vlaneseq
    %v2087 = vshrl.u32 %v2086, 7
    %v2088 = vsub.s32 %v1729, %v2087
    %v2089 = vrot.slane %v2046, %v2088
    %v2090 = vsel %vm1734, %v2089, %v2085
    %v2091 = vlaneseq
    %v2092 = vshrl.u32 %v2091, 7
    %v2093 = vsub.s32 %v1736, %v2092
    %v2094 = vrot.slane %v2049, %v2093
    %v2095 = vsel %vm1741, %v2094, %v2090
    %v2096 = vsel %vm1762, %v2095, %v2076
    %v2098 = vsel %vm1765, %v2096, 0.0
    %2099 = vadd.xlane.f32.xlu0 %v2098
    %v2100 = vpop.xlane.xlu0 %2099
    %v2101 = vmul.f32 %v1638, %v1666
    %v2102 = vmul.f32 %v1639, %v1667
    %v2103 = vmul.f32 %v1640, %v1668
    %v2104 = vmul.f32 %v1641, %v1669
    %v2105 = vmul.f32 %v1642, %v1666
    %v2106 = vmul.f32 %v1643, %v1667
    %v2107 = vmul.f32 %v1644, %v1668
    %v2108 = vmul.f32 %v1645, %v1669
    %v2109 = vsel %vm1682, %v2101, 0.0
    %2110 = vadd.xlane.f32.xlu0 %v2109
    %v2111 = vpop.xlane.xlu0 %2110
    %v2112 = vsel %vm1682, %v2102, 0.0
    %2113 = vadd.xlane.f32.xlu0 %v2112
    %v2114 = vpop.xlane.xlu0 %2113
    %v2115 = vsel %vm1682, %v2103, 0.0
    %2116 = vadd.xlane.f32.xlu0 %v2115
    %v2117 = vpop.xlane.xlu0 %2116
    %v2118 = vsel %vm1692, %v2104, 0.0
    %2119 = vadd.xlane.f32.xlu0 %v2118
    %v2120 = vpop.xlane.xlu0 %2119
    %v2121 = vsel %vm1682, %v2105, 0.0
    %2122 = vadd.xlane.f32.xlu0 %v2121
    %v2123 = vpop.xlane.xlu0 %2122
    %v2124 = vsel %vm1682, %v2106, 0.0
    %2125 = vadd.xlane.f32.xlu0 %v2124
    %v2126 = vpop.xlane.xlu0 %2125
    %v2127 = vsel %vm1682, %v2107, 0.0
    %2128 = vadd.xlane.f32.xlu0 %v2127
    %v2129 = vpop.xlane.xlu0 %2128
    %v2130 = vsel %vm1692, %v2108, 0.0
    %2131 = vadd.xlane.f32.xlu0 %v2130
    %v2132 = vpop.xlane.xlu0 %2131
    %v2141 = vlaneseq
    %v2142 = vshrl.u32 %v2141, 7
    %v2143 = vsub.s32 %v1717, %v2142
    %v2144 = vrot.slane %v2111, %v2143
    %v2145 = vlaneseq
    %v2146 = vshrl.u32 %v2145, 7
    %v2147 = vsub.s32 %v1722, %v2146
    %v2148 = vrot.slane %v2114, %v2147
    %v2149 = vsel %vm1727, %v2148, %v2144
    %v2150 = vlaneseq
    %v2151 = vshrl.u32 %v2150, 7
    %v2152 = vsub.s32 %v1729, %v2151
    %v2153 = vrot.slane %v2117, %v2152
    %v2154 = vsel %vm1734, %v2153, %v2149
    %v2155 = vlaneseq
    %v2156 = vshrl.u32 %v2155, 7
    %v2157 = vsub.s32 %v1736, %v2156
    %v2158 = vrot.slane %v2120, %v2157
    %v2159 = vsel %vm1741, %v2158, %v2154
    %v2160 = vlaneseq
    %v2161 = vshrl.u32 %v2160, 7
    %v2162 = vsub.s32 %v1717, %v2161
    %v2163 = vrot.slane %v2123, %v2162
    %v2164 = vlaneseq
    %v2165 = vshrl.u32 %v2164, 7
    %v2166 = vsub.s32 %v1722, %v2165
    %v2167 = vrot.slane %v2126, %v2166
    %v2168 = vsel %vm1727, %v2167, %v2163
    %v2169 = vlaneseq
    %v2170 = vshrl.u32 %v2169, 7
    %v2171 = vsub.s32 %v1729, %v2170
    %v2172 = vrot.slane %v2129, %v2171
    %v2173 = vsel %vm1734, %v2172, %v2168
    %v2174 = vlaneseq
    %v2175 = vshrl.u32 %v2174, 7
    %v2176 = vsub.s32 %v1736, %v2175
    %v2177 = vrot.slane %v2132, %v2176
    %v2178 = vsel %vm1741, %v2177, %v2173
    %v2179 = vsel %vm1762, %v2178, %v2159
    %v2181 = vsel %vm1765, %v2179, 0.0
    %2182 = vadd.xlane.f32.xlu0 %v2181
    %v2183 = vpop.xlane.xlu0 %2182
    %v2184 = vmul.f32 %v1638, %v1670
    %v2185 = vmul.f32 %v1639, %v1671
    %v2186 = vmul.f32 %v1640, %v1672
    %v2187 = vmul.f32 %v1641, %v1673
    %v2188 = vmul.f32 %v1642, %v1670
    %v2189 = vmul.f32 %v1643, %v1671
    %v2190 = vmul.f32 %v1644, %v1672
    %v2191 = vmul.f32 %v1645, %v1673
    %v2192 = vsel %vm1682, %v2184, 0.0
    %2193 = vadd.xlane.f32.xlu0 %v2192
    %v2194 = vpop.xlane.xlu0 %2193
    %v2195 = vsel %vm1682, %v2185, 0.0
    %2196 = vadd.xlane.f32.xlu0 %v2195
    %v2197 = vpop.xlane.xlu0 %2196
    %v2198 = vsel %vm1682, %v2186, 0.0
    %2199 = vadd.xlane.f32.xlu0 %v2198
    %v2200 = vpop.xlane.xlu0 %2199
    %v2201 = vsel %vm1692, %v2187, 0.0
    %2202 = vadd.xlane.f32.xlu0 %v2201
    %v2203 = vpop.xlane.xlu0 %2202
    %v2204 = vsel %vm1682, %v2188, 0.0
    %2205 = vadd.xlane.f32.xlu0 %v2204
    %v2206 = vpop.xlane.xlu0 %2205
    %v2207 = vsel %vm1682, %v2189, 0.0
    %2208 = vadd.xlane.f32.xlu0 %v2207
    %v2209 = vpop.xlane.xlu0 %2208
    %v2210 = vsel %vm1682, %v2190, 0.0
    %2211 = vadd.xlane.f32.xlu0 %v2210
    %v2212 = vpop.xlane.xlu0 %2211
    %v2213 = vsel %vm1692, %v2191, 0.0
    %2214 = vadd.xlane.f32.xlu0 %v2213
    %v2215 = vpop.xlane.xlu0 %2214
    %v2224 = vlaneseq
    %v2225 = vshrl.u32 %v2224, 7
    %v2226 = vsub.s32 %v1717, %v2225
    %v2227 = vrot.slane %v2194, %v2226
    %v2228 = vlaneseq
    %v2229 = vshrl.u32 %v2228, 7
    %v2230 = vsub.s32 %v1722, %v2229
    %v2231 = vrot.slane %v2197, %v2230
    %v2232 = vsel %vm1727, %v2231, %v2227
    %v2233 = vlaneseq
    %v2234 = vshrl.u32 %v2233, 7
    %v2235 = vsub.s32 %v1729, %v2234
    %v2236 = vrot.slane %v2200, %v2235
    %v2237 = vsel %vm1734, %v2236, %v2232
    %v2238 = vlaneseq
    %v2239 = vshrl.u32 %v2238, 7
    %v2240 = vsub.s32 %v1736, %v2239
    %v2241 = vrot.slane %v2203, %v2240
    %v2242 = vsel %vm1741, %v2241, %v2237
    %v2243 = vlaneseq
    %v2244 = vshrl.u32 %v2243, 7
    %v2245 = vsub.s32 %v1717, %v2244
    %v2246 = vrot.slane %v2206, %v2245
    %v2247 = vlaneseq
    %v2248 = vshrl.u32 %v2247, 7
    %v2249 = vsub.s32 %v1722, %v2248
    %v2250 = vrot.slane %v2209, %v2249
    %v2251 = vsel %vm1727, %v2250, %v2246
    %v2252 = vlaneseq
    %v2253 = vshrl.u32 %v2252, 7
    %v2254 = vsub.s32 %v1729, %v2253
    %v2255 = vrot.slane %v2212, %v2254
    %v2256 = vsel %vm1734, %v2255, %v2251
    %v2257 = vlaneseq
    %v2258 = vshrl.u32 %v2257, 7
    %v2259 = vsub.s32 %v1736, %v2258
    %v2260 = vrot.slane %v2215, %v2259
    %v2261 = vsel %vm1741, %v2260, %v2256
    %v2262 = vsel %vm1762, %v2261, %v2242
    %v2264 = vsel %vm1765, %v2262, 0.0
    %2265 = vadd.xlane.f32.xlu0 %v2264
    %v2266 = vpop.xlane.xlu0 %2265
    %vm2267 = vcmask 7168
    %v2268 = vsel %vm2267, %v1768, %v1851
    %vm2269 = vcmask 15360
    %v2270 = vsel %vm2269, %v2268, %v1934
    %vm2271 = vcmask 23552
    %v2272 = vsel %vm2271, %v2270, %v2017
    %vm2273 = vcmask 31744
    %v2274 = vsel %vm2273, %v2272, %v2100
    %vm2275 = vcmask 39936
    %v2276 = vsel %vm2275, %v2274, %v2183
    %vm2277 = vcmask 48128
    %v2278 = vsel %vm2277, %v2276, %v2266
    %v2279 = vld [vmem:[%s2] sm:$0x1]
    %v2281 = vlaneseq
    %v2282 = vshrl.u32 %v2281, 7
    %v2283 = vsub.s32 0, %v2282
    %v2284 = vrot.slane %v2279, %v2283
    %v2286 = vadd.f32 %v2278, %v2284
    %vm2287 = vcmask 50176
    %v2288 = vsel %vm2287, %v2286, -inf
    %2289 = vmax.xlane.f32.xlu0 %v2288
    %v2290 = vpop.xlane.xlu0 %2289
    %v2291 = vsub.f32 %v2286, %v2290
    %v2292 = vmul.f32 %v2291, 1.442695
    %v2293 = vpow.pop %v2292
    %v2294 = vsel %vm2287, %v2293, 0.0
    %2295 = vadd.xlane.f32.xlu0 %v2294
    %v2296 = vpop.xlane.xlu0 %2295
    %v2297 = vrcp.pop %v2296
    %v2298 = vmul.f32 %v2293, %v2297
    %2299 = vst.msk [vmem:[#allocation8] sm:$0x3] %vm2287, %v2298
    // Predicated region
    $region30: #{tpu_custom_call.1} parent=1 // pred_check
      _
    $region31: #{tpu_custom_call.1} parent=1 // pred_check_branch
      %2301 = sbr.rel (0) target = $region33
    $region32: #{tpu_custom_call.1} parent=1 // pred_region
      %s2303 = ssub.s32 32, 32
      %2304 = vsyncadd [#allocation4], %s2303
      %s2306 = sshll.u32 [#allocation8], 4
      %s2307 = int_to_ptr.vmem [resolvable:$true] %s2306
      %2309 = dma.vmem_to_hbm [thread:$0]  %s2307, 32, %s4, [#allocation4]
    $region33: #{tpu_custom_call.1} parent=1 // pred_fallthru
      _
    // Predicated region
    $region34: #{tpu_custom_call.1} parent=1 // pred_check
      _
    $region35: #{tpu_custom_call.1} parent=1 // pred_check_branch
      %2311 = sbr.rel (0) target = $region37
    $region36: #{tpu_custom_call.1} parent=1 // pred_region
      %2312 = dma.done [#allocation4], 32
    $region37: #{tpu_custom_call.1} parent=1 // pred_fallthru
      _
    %2313 = vsyncpa [#allocation3], 1
    %2314 = vsyncpa [#allocation6], 1
    %2315 = vsyncpa [#allocation4], 1

</llo_original>
